<compile_context>
chip_gen: v7x
topology: tpu7x:2x2x1
jax: 0.10.0
libtpu: 0.0.40
codegen_flags: <defaults>
</compile_context>

<pallas_src>
import jax
import jax.numpy as jnp
from jax.experimental import pallas as pl
from jax.experimental.pallas import tpu as pltpu

KERNEL_SIZES = (3, 4, 5)
K_MAX = max(KERNEL_SIZES)
LANE = 128


def _round_up(x, m):
    return (x + m - 1) // m * m


def textcnn_kernel(x_ref, wc_ref, bc_ref, mask_ref, fcw_ref, fcb_ref, out_ref):
    # Shapes are inferred from the refs: x (TM, K_pad) bf16, mask (T, CF) f32.
    TM = x_ref.shape[0]
    T, CF = mask_ref.shape
    TB = TM // T

    # Whole conv stage = a single MXU matmul, f32 accumulation.
    conv = jnp.dot(x_ref[...], wc_ref[...], preferred_element_type=jnp.float32)
    conv = jnp.maximum(conv + bc_ref[...], 0.0)            # bias + relu, f32

    # Mask time positions invalid for each branch, then max over time.
    # INVARIANT: post-ReLU values are >= 0 and t=0 is always valid, so masking
    # invalid slots to 0 cannot win the max.  Mask is precomputed in the
    # wrapper and VMEM-resident (constant index map) — one vmul here.
    conv = conv.reshape(TB, T, CF) * mask_ref[...]
    pooled = jnp.max(conv, axis=1)                          # (TB, CF) f32

    # Dropout(p=0.5) is identity at inference.  Final FC on lane-dense C_pad.
    out_ref[...] = (jnp.dot(pooled.astype(fcw_ref.dtype), fcw_ref[...],
                            preferred_element_type=jnp.float32)
                    + fcb_ref[...])                         # (TB, C_pad) f32


def cnn_classifier_forward(x, params, *, batch_tile=64):
    """x: int32 token ids (B, T). Returns logits, squeezed like torch .squeeze()."""
    emb_table = params["embedding"]                         # (V, D)
    B, T = x.shape
    D = emb_table.shape[-1]
    assert T >= K_MAX, "sequence length must be >= max kernel size"

    F = params["conv_w"][0].shape[-1]
    C = params["fc_w"].shape[-1]
    F_pad = _round_up(F, LANE)                              # 100 -> 128
    C_pad = _round_up(C, LANE)                              # 1   -> 128
    CF = F_pad * len(KERNEL_SIZES)                          # 384
    K_IN = K_MAX * D                                        # 160
    K_pad = _round_up(K_IN, 256)                            # 160 -> 256 (MXU depth)

    # Batch tile: big enough to fill the MXU M side (TM = TB*T), but capped so
    # tiny batches aren't over-padded and the f32 epilogue temporaries
    # (TM * CF * 4 B) stay comfortably inside v7x's smaller VMEM.
    TB = min(batch_tile, _round_up(B, 16))
    while TB > 16 and TB * T > 2048:
        TB //= 2
    B_pad = _round_up(B, TB)
    TM = TB * T

    # TODO(synk): fuse the embedding gather into the kernel (scalar-prefetched
    # token ids + per-row DMA from the table in pl.ANY/HBM) — most valuable on
    # v5e where this XLA gather round-trips the activations through HBM.
    emb = jnp.take(emb_table, x, axis=0).astype(jnp.bfloat16)        # (B, T, D)
    emb = jnp.pad(emb, ((0, B_pad - B), (0, K_MAX - 1), (0, 0)))     # time-pad

    # Lane-dense im2col built ONCE in the wrapper (outside the per-step body):
    # X[b*T + t, :] = concat(emb[b, t+i, :] for i in range(K_MAX)), zero-padded
    # to the 256-deep contraction.
    x_col = jnp.concatenate([emb[:, i:i + T, :] for i in range(K_MAX)], axis=-1)
    x_col = jnp.pad(x_col, ((0, 0), (0, 0), (0, K_pad - K_IN)))
    x_col = x_col.reshape(B_pad * T, K_pad)                 # (B_pad*T, 256) bf16

    # Fuse the conv branches: zero-pad each (k, D, F) weight to the common
    # window K_MAX and to F_pad filters, concat along the filter axis, then
    # zero-pad the contraction dim to K_pad.
    w_all = jnp.zeros((K_MAX, D, CF), jnp.float32)
    b_all = jnp.zeros((1, CF), jnp.float32)
    for j, (k, w, b) in enumerate(zip(KERNEL_SIZES, params["conv_w"],
                                      params["conv_b"])):
        w_all = w_all.at[:k, :, j * F_pad:j * F_pad + F].set(w)
        b_all = b_all.at[:, j * F_pad:j * F_pad + F].set(b)
    w_all = w_all.reshape(K_IN, CF)
    w_all = jnp.pad(w_all, ((0, K_pad - K_IN), (0, 0))).astype(jnp.bfloat16)

    # Hoisted time-validity mask: mask[t, col] = 1 iff t <= T - k(branch(col)).
    col_branch = jnp.arange(CF, dtype=jnp.int32)[None, :] // F_pad   # (1, CF)
    limits = jnp.asarray([T - k for k in KERNEL_SIZES], dtype=jnp.int32)
    t_idx = jnp.arange(T, dtype=jnp.int32)[:, None]                  # (T, 1)
    mask = (t_idx <= limits[col_branch]).astype(jnp.float32)         # (T, CF)

    fc_w = jnp.zeros((CF, C_pad), jnp.float32)
    for j in range(len(KERNEL_SIZES)):
        fc_w = fc_w.at[j * F_pad:j * F_pad + F, :C].set(
            params["fc_w"][j * F:(j + 1) * F, :])
    fc_w = fc_w.astype(jnp.bfloat16)
    fc_b = jnp.zeros((1, C_pad), jnp.float32).at[:, :C].set(params["fc_b"])

    out = pl.pallas_call(
        textcnn_kernel,
        out_shape=jax.ShapeDtypeStruct((B_pad, C_pad), jnp.float32),
        grid=(B_pad // TB,),
        in_specs=[
            pl.BlockSpec((TM, K_pad), lambda i: (i, 0)),    # im2col activations
            pl.BlockSpec((K_pad, CF), lambda i: (0, 0)),    # fused conv W (resident)
            pl.BlockSpec((1, CF), lambda i: (0, 0)),        # fused conv b
            pl.BlockSpec((T, CF), lambda i: (0, 0)),        # hoisted time mask
            pl.BlockSpec((CF, C_pad), lambda i: (0, 0)),    # fc W (padded)
            pl.BlockSpec((1, C_pad), lambda i: (0, 0)),     # fc b (padded)
        ],
        out_specs=pl.BlockSpec((TB, C_pad), lambda i: (i, 0)),
        compiler_params=pltpu.CompilerParams(
            # "parallel" lets the batch-tile axis shard across TensorCores on
            # megacore parts; per-step working set is small, so default VMEM
            # limits are sufficient on all of v5e/v6e/v7x.
            dimension_semantics=("parallel",)),
    )(x_col, w_all, b_all, mask, fc_w, fc_b)

    return jnp.squeeze(out[:B, :C])                         # torch .squeeze() semantics


def init_params(key, vocab_size, embed_dim, kernel_sizes=KERNEL_SIZES,
                num_filters=100, num_classes=1):
    keys = jax.random.split(key, 2 + 2 * len(kernel_sizes) + 2)
    emb = 0.1 * jax.random.normal(keys[0], (vocab_size, embed_dim), jnp.float32)
    emb = emb.at[0].set(0.0)                                 # padding_idx=0
    conv_w, conv_b = [], []
    for j, k in enumerate(kernel_sizes):
        # PyTorch conv weight is (F, 1, k, D); store as (k, D, F) for matmul form.
        w = 0.1 * jax.random.normal(keys[1 + 2 * j], (k, embed_dim, num_filters),
                                    jnp.float32)
        b = 0.1 * jax.random.normal(keys[2 + 2 * j], (1, num_filters), jnp.float32)
        conv_w.append(w)
        conv_b.append(b)
    fc_in = num_filters * len(kernel_sizes)
    fc_w = 0.1 * jax.random.normal(keys[-2], (fc_in, num_classes), jnp.float32)
    fc_b = 0.1 * jax.random.normal(keys[-1], (1, num_classes), jnp.float32)
    return {"embedding": emb, "conv_w": conv_w, "conv_b": conv_b,
            "fc_w": fc_w, "fc_b": fc_b}


def reference_forward(x, params):
    """Pure-JAX f32 reference mirroring the PyTorch forward (eval mode)."""
    emb = jnp.take(params["embedding"], x, axis=0)           # (B, T, D)
    B, T, D = emb.shape
    pooled = []
    for k, w, b in zip(KERNEL_SIZES, params["conv_w"], params["conv_b"]):
        t_out = T - k + 1
        acc = jnp.zeros((B, t_out, w.shape[-1]), jnp.float32)
        for i in range(k):
            acc = acc + jnp.einsum("btd,df->btf", emb[:, i:i + t_out, :], w[i])
        acc = jnp.maximum(acc + b[None], 0.0)
        pooled.append(jnp.max(acc, axis=1))
    cat = jnp.concatenate(pooled, axis=1)
    return jnp.squeeze(cat @ params["fc_w"] + params["fc_b"])


if __name__ == "__main__":
    key = jax.random.PRNGKey(0)
    k_param, k_data = jax.random.split(key)

    vocab_size, embed_dim, num_filters, num_classes = 50, 32, 100, 1
    B, T = 2, 16

    params = init_params(k_param, vocab_size, embed_dim,
                         num_filters=num_filters, num_classes=num_classes)
    x = jax.random.randint(k_data, (B, T), 0, vocab_size, dtype=jnp.int32)

    out = cnn_classifier_forward(x, params)
    out = jax.block_until_ready(out)

    ref = jax.block_until_ready(reference_forward(x, params))
    assert out.shape == (B,), out.shape
    # bf16 matmul inputs vs f32 reference -> slightly looser tolerance.
    assert jnp.allclose(out, ref, atol=2e-2, rtol=2e-2), (out, ref)

    print("KERNEL_OK")
</pallas_src>

<mosaic_0001>
module attributes {stable_mosaic.version = 11 : i64} {
  func.func @textcnn_kernel(%arg0: i32, %arg1: memref<256x256xbf16, #tpu.memory_space<vmem>>, %arg2: memref<256x384xbf16, #tpu.memory_space<vmem>>, %arg3: memref<1x384xf32, #tpu.memory_space<vmem>>, %arg4: memref<16x384xf32, #tpu.memory_space<vmem>>, %arg5: memref<384x128xbf16, #tpu.memory_space<vmem>>, %arg6: memref<1x128xf32, #tpu.memory_space<vmem>>, %arg7: memref<16x128xf32, #tpu.memory_space<vmem>>) attributes {dimension_semantics = [#tpu.dimension_semantics<parallel>], iteration_bounds = array<i64: 1>, scalar_prefetch = 0 : i64, scratch_operands = 0 : i64, tpu.core_type = #tpu.core_type<tc>, window_params = [{transform_indices = @transform_0, window_bounds = array<i64: 256, 256>}, {pipeline_mode = #tpu.pipeline_mode<synchronous>, transform_indices = @transform_1, window_bounds = array<i64: 256, 384>}, {pipeline_mode = #tpu.pipeline_mode<synchronous>, transform_indices = @transform_2, window_bounds = array<i64: 1, 384>}, {pipeline_mode = #tpu.pipeline_mode<synchronous>, transform_indices = @transform_3, window_bounds = array<i64: 16, 384>}, {pipeline_mode = #tpu.pipeline_mode<synchronous>, transform_indices = @transform_4, window_bounds = array<i64: 384, 128>}, {pipeline_mode = #tpu.pipeline_mode<synchronous>, transform_indices = @transform_5, window_bounds = array<i64: 1, 128>}, {transform_indices = @transform_6, window_bounds = array<i64: 16, 128>}]} {
    %c0 = arith.constant 0 : index
    %c0_0 = arith.constant 0 : index
    %0 = vector.load %arg1[%c0, %c0_0] : memref<256x256xbf16, #tpu.memory_space<vmem>>, vector<256x256xbf16>
    %c0_1 = arith.constant 0 : index
    %c0_2 = arith.constant 0 : index
    %1 = vector.load %arg2[%c0_1, %c0_2] : memref<256x384xbf16, #tpu.memory_space<vmem>>, vector<256x384xbf16>
    %cst = arith.constant dense<0.000000e+00> : vector<256x384xf32>
    %2 = tpu.matmul %0, %1, %cst {dimension_numbers = #tpu.dot_dimension_numbers<[1], [0], [0], [1], [0, 0, 1, 1], [], []>} : vector<256x256xbf16>, vector<256x384xbf16>, vector<256x384xf32> -> vector<256x384xf32>
    %c0_3 = arith.constant 0 : index
    %c0_4 = arith.constant 0 : index
    %3 = vector.load %arg3[%c0_3, %c0_4] : memref<1x384xf32, #tpu.memory_space<vmem>>, vector<1x384xf32>
    %4 = vector.broadcast %3 : vector<1x384xf32> to vector<256x384xf32>
    %5 = arith.addf %2, %4 : vector<256x384xf32>
    %cst_5 = arith.constant 0.000000e+00 : f32
    %6 = vector.broadcast %cst_5 : f32 to vector<256x384xf32>
    %7 = arith.maximumf %5, %6 : vector<256x384xf32>
    %8 = vector.shape_cast %7 : vector<256x384xf32> to vector<16x16x384xf32>
    %c0_6 = arith.constant 0 : index
    %c0_7 = arith.constant 0 : index
    %9 = vector.load %arg4[%c0_6, %c0_7] : memref<16x384xf32, #tpu.memory_space<vmem>>, vector<16x384xf32>
    %10 = vector.shape_cast %9 : vector<16x384xf32> to vector<1x16x384xf32>
    %11 = vector.broadcast %10 : vector<1x16x384xf32> to vector<16x16x384xf32>
    %12 = arith.mulf %8, %11 : vector<16x16x384xf32>
    %cst_8 = arith.constant dense<0xFF800000> : vector<16x384xf32>
    %13 = vector.multi_reduction <maximumf>, %12, %cst_8 [1] : vector<16x16x384xf32> to vector<16x384xf32>
    %14 = arith.truncf %13 : vector<16x384xf32> to vector<16x384xbf16>
    %c0_9 = arith.constant 0 : index
    %c0_10 = arith.constant 0 : index
    %15 = vector.load %arg5[%c0_9, %c0_10] : memref<384x128xbf16, #tpu.memory_space<vmem>>, vector<384x128xbf16>
    %cst_11 = arith.constant dense<0.000000e+00> : vector<16x128xf32>
    %16 = tpu.matmul %14, %15, %cst_11 {dimension_numbers = #tpu.dot_dimension_numbers<[1], [0], [0], [1], [0, 0, 1, 1], [], []>} : vector<16x384xbf16>, vector<384x128xbf16>, vector<16x128xf32> -> vector<16x128xf32>
    %c0_12 = arith.constant 0 : index
    %c0_13 = arith.constant 0 : index
    %17 = vector.load %arg6[%c0_12, %c0_13] : memref<1x128xf32, #tpu.memory_space<vmem>>, vector<1x128xf32>
    %18 = vector.broadcast %17 : vector<1x128xf32> to vector<16x128xf32>
    %19 = arith.addf %16, %18 : vector<16x128xf32>
    %c0_14 = arith.constant 0 : index
    %c0_15 = arith.constant 0 : index
    %20 = vector.load %arg7[%c0_14, %c0_15] : memref<16x128xf32, #tpu.memory_space<vmem>>, vector<16x128xf32>
    tpu.vector_store %arg7[%c0_14, %c0_15], %19 {strides = array<i32>} : memref<16x128xf32, #tpu.memory_space<vmem>>, vector<16x128xf32>,
    return
  }
  func.func @transform_0(%arg0: i32) -> (i32, i32) {
    %c0_i32 = arith.constant 0 : i32
    %c0_i32_0 = arith.constant 0 : i32
    return %arg0, %c0_i32 : i32, i32
  }
  func.func @transform_1(%arg0: i32) -> (i32, i32) {
    %c0_i32 = arith.constant 0 : i32
    %c0_i32_0 = arith.constant 0 : i32
    %c0_i32_1 = arith.constant 0 : i32
    return %c0_i32, %c0_i32_0 : i32, i32
  }
  func.func @transform_2(%arg0: i32) -> (i32, i32) {
    %c0_i32 = arith.constant 0 : i32
    %c0_i32_0 = arith.constant 0 : i32
    %c0_i32_1 = arith.constant 0 : i32
    return %c0_i32, %c0_i32_0 : i32, i32
  }
  func.func @transform_3(%arg0: i32) -> (i32, i32) {
    %c0_i32 = arith.constant 0 : i32
    %c0_i32_0 = arith.constant 0 : i32
    %c0_i32_1 = arith.constant 0 : i32
    return %c0_i32, %c0_i32_0 : i32, i32
  }
  func.func @transform_4(%arg0: i32) -> (i32, i32) {
    %c0_i32 = arith.constant 0 : i32
    %c0_i32_0 = arith.constant 0 : i32
    %c0_i32_1 = arith.constant 0 : i32
    return %c0_i32, %c0_i32_0 : i32, i32
  }
  func.func @transform_5(%arg0: i32) -> (i32, i32) {
    %c0_i32 = arith.constant 0 : i32
    %c0_i32_0 = arith.constant 0 : i32
    %c0_i32_1 = arith.constant 0 : i32
    return %c0_i32, %c0_i32_0 : i32, i32
  }
  func.func @transform_6(%arg0: i32) -> (i32, i32) {
    %c0_i32 = arith.constant 0 : i32
    %c0_i32_0 = arith.constant 0 : i32
    return %arg0, %c0_i32 : i32, i32
  }
}

</mosaic_0001>

<llo_original>
// kernel: tpu_custom_call.1
$region0: #{tpu_custom_call.1}
  #allocation0 [shape = 'u32[]', space=smem, size = 0x4, offset = 0x4, fixed_abs, tag = 'smem constant byte address 0x4 - core index']
  #allocation1 [shape = 'u32[144,128]{1,0:T(1,128)}', space=vmem, size = 0x12000, scoped, tag = 'internal scratch']
  %s0 = inlined_call_operand.hbm [shape: bf16[256,256], index: 0, kind: input, shape index: {}]
  %s1 = inlined_call_operand.hbm [shape: bf16[256,384], index: 1, kind: input, shape index: {}]
  %s2 = inlined_call_operand.vmem [shape: f32[1,384], index: 2, kind: input, shape index: {}]
  %s3 = inlined_call_operand.hbm [shape: f32[16,384], index: 3, kind: input, shape index: {}]
  %s4 = inlined_call_operand.hbm [shape: bf16[384,128], index: 4, kind: input, shape index: {}]
  %s5 = inlined_call_operand.vmem [shape: f32[1,128], index: 5, kind: input, shape index: {}]
  %s6 = inlined_call_operand.hbm [shape: f32[16,128], index: 6, kind: output, shape index: {}]
  %s7 = sld [smem:[#allocation0]]
  $region50: #{tpu_custom_call.1} parent=0
    _
  %s9 = ssub.s32 1, %s7
  %s10 = scalar_select 0, %s9, %s7
  $region1: #{tpu_custom_call.1} parent=0
    #allocation2 [shape = 'u8[131072]{0}', space=vmem, size = 0x20000, scoped, tag = 'input window, operand 0, single buffered']
    #allocation3 [shape = 's32[1]{0}', space=sflag, size = 0x4, scoped, tag = 'scoped memory for tpu_custom_call.1']
    #allocation4 [shape = 's32[1]{0}', space=sflag, size = 0x4, scoped, tag = 'scoped memory for tpu_custom_call.1']
    #allocation5 [shape = 'u8[196608]{0}', space=vmem, size = 0x30000, scoped, tag = 'input window, operand 1, single buffered']
    #allocation6 [shape = 's32[1]{0}', space=sflag, size = 0x4, scoped, tag = 'scoped memory for tpu_custom_call.1']
    #allocation7 [shape = 'u8[24576]{0}', space=vmem, size = 0x6000, scoped, tag = 'input window, operand 3, single buffered']
    #allocation8 [shape = 'u8[98304]{0}', space=vmem, size = 0x18000, scoped, tag = 'input window, operand 4, single buffered']
    #allocation9 [shape = 's32[1]{0}', space=sflag, size = 0x4, scoped, tag = 'scoped memory for tpu_custom_call.1']
    #allocation10 [shape = 'u8[8192]{0}', space=vmem, size = 0x2000, scoped, tag = 'output window, operand 0, single buffered']
    %11 = vsyncpa [#allocation3], 0
    %12 = vsyncpa [#allocation6], 0
    %13 = vsyncpa [#allocation9], 0
    %14 = vsyncpa [#allocation4], 0
    // Predicated region
    $region2: #{tpu_custom_call.1} parent=1 // pred_check
      _
    $region3: #{tpu_custom_call.1} parent=1 // pred_check_branch
      %16 = sbr.rel (0) target = $region5
    $region4: #{tpu_custom_call.1} parent=1 // pred_region
      %s18 = ssub.s32 4096, 4096
      %19 = vsyncadd [#allocation3], %s18
      %s20 = sshll.u32 [#allocation2], 4
      %s21 = int_to_ptr.vmem [resolvable:$true] %s20
      %26 = dma.hbm_to_vmem [thread:$0]  %s0, 4096, %s21, [#allocation3], 128, 128, 8
    $region5: #{tpu_custom_call.1} parent=1 // pred_fallthru
      _
    // Predicated region
    $region6: #{tpu_custom_call.1} parent=1 // pred_check
      _
    $region7: #{tpu_custom_call.1} parent=1 // pred_check_branch
      %28 = sbr.rel (0) target = $region9
    $region8: #{tpu_custom_call.1} parent=1 // pred_region
      %s30 = ssub.s32 6144, 6144
      %31 = vsyncadd [#allocation6], %s30
      %s32 = sshll.u32 [#allocation5], 4
      %s33 = int_to_ptr.vmem [resolvable:$true] %s32
      %38 = dma.hbm_to_vmem [thread:$0]  %s1, 6144, %s33, [#allocation6], 192, 192, 12
    $region9: #{tpu_custom_call.1} parent=1 // pred_fallthru
      _
    // Predicated region
    $region10: #{tpu_custom_call.1} parent=1 // pred_check
      _
    $region11: #{tpu_custom_call.1} parent=1 // pred_check_branch
      %40 = sbr.rel (0) target = $region13
    $region12: #{tpu_custom_call.1} parent=1 // pred_region
      _
    $region13: #{tpu_custom_call.1} parent=1 // pred_fallthru
      _
    // Predicated region
    $region14: #{tpu_custom_call.1} parent=1 // pred_check
      _
    $region15: #{tpu_custom_call.1} parent=1 // pred_check_branch
      %42 = sbr.rel (0) target = $region17
    $region16: #{tpu_custom_call.1} parent=1 // pred_region
      %s44 = ssub.s32 768, 768
      %45 = vsyncadd [#allocation6], %s44
      %s46 = sshll.u32 [#allocation7], 4
      %s47 = int_to_ptr.vmem [resolvable:$true] %s46
      %52 = dma.hbm_to_vmem [thread:$0]  %s3, 768, %s47, [#allocation6], 384, 384, 24
    $region17: #{tpu_custom_call.1} parent=1 // pred_fallthru
      _
    // Predicated region
    $region18: #{tpu_custom_call.1} parent=1 // pred_check
      _
    $region19: #{tpu_custom_call.1} parent=1 // pred_check_branch
      %54 = sbr.rel (0) target = $region21
    $region20: #{tpu_custom_call.1} parent=1 // pred_region
      %s56 = ssub.s32 3072, 3072
      %57 = vsyncadd [#allocation9], %s56
      %s58 = sshll.u32 [#allocation8], 4
      %s59 = int_to_ptr.vmem [resolvable:$true] %s58
      %64 = dma.hbm_to_vmem [thread:$0]  %s4, 3072, %s59, [#allocation9], 64, 64, 4
    $region21: #{tpu_custom_call.1} parent=1 // pred_fallthru
      _
    // Predicated region
    $region22: #{tpu_custom_call.1} parent=1 // pred_check
      _
    $region23: #{tpu_custom_call.1} parent=1 // pred_check_branch
      %66 = sbr.rel (0) target = $region25
    $region24: #{tpu_custom_call.1} parent=1 // pred_region
      _
    $region25: #{tpu_custom_call.1} parent=1 // pred_fallthru
      _
    // Predicated region
    $region26: #{tpu_custom_call.1} parent=1 // pred_check
      _
    $region27: #{tpu_custom_call.1} parent=1 // pred_check_branch
      %68 = sbr.rel (0) target = $region29
    $region28: #{tpu_custom_call.1} parent=1 // pred_region
      %69 = dma.done [#allocation3], 4096
    $region29: #{tpu_custom_call.1} parent=1 // pred_fallthru
      _
    // Predicated region
    $region30: #{tpu_custom_call.1} parent=1 // pred_check
      _
    $region31: #{tpu_custom_call.1} parent=1 // pred_check_branch
      %71 = sbr.rel (0) target = $region33
    $region32: #{tpu_custom_call.1} parent=1 // pred_region
      %72 = dma.done [#allocation6], 6144
    $region33: #{tpu_custom_call.1} parent=1 // pred_fallthru
      _
    // Predicated region
    $region34: #{tpu_custom_call.1} parent=1 // pred_check
      _
    $region35: #{tpu_custom_call.1} parent=1 // pred_check_branch
      %74 = sbr.rel (0) target = $region37
    $region36: #{tpu_custom_call.1} parent=1 // pred_region
      %75 = dma.done [#allocation6], 768
    $region37: #{tpu_custom_call.1} parent=1 // pred_fallthru
      _
    // Predicated region
    $region38: #{tpu_custom_call.1} parent=1 // pred_check
      _
    $region39: #{tpu_custom_call.1} parent=1 // pred_check_branch
      %77 = sbr.rel (0) target = $region41
    $region40: #{tpu_custom_call.1} parent=1 // pred_region
      %78 = dma.done [#allocation9], 3072
    $region41: #{tpu_custom_call.1} parent=1 // pred_fallthru
      _
    %v80 = vld [vmem:[#allocation2] sm:$0xff]
    %v81 = vld [vmem:[#allocation2 + $0x8] sm:$0xff]
    %v82 = vld [vmem:[#allocation2 + $0x10] sm:$0xff]
    %v83 = vld [vmem:[#allocation2 + $0x18] sm:$0xff]
    %v84 = vld [vmem:[#allocation2 + $0x20] sm:$0xff]
    %v85 = vld [vmem:[#allocation2 + $0x28] sm:$0xff]
    %v86 = vld [vmem:[#allocation2 + $0x30] sm:$0xff]
    %v87 = vld [vmem:[#allocation2 + $0x38] sm:$0xff]
    %v88 = vld [vmem:[#allocation2 + $0x40] sm:$0xff]
    %v89 = vld [vmem:[#allocation2 + $0x48] sm:$0xff]
    %v90 = vld [vmem:[#allocation2 + $0x50] sm:$0xff]
    %v91 = vld [vmem:[#allocation2 + $0x58] sm:$0xff]
    %v92 = vld [vmem:[#allocation2 + $0x60] sm:$0xff]
    %v93 = vld [vmem:[#allocation2 + $0x68] sm:$0xff]
    %v94 = vld [vmem:[#allocation2 + $0x70] sm:$0xff]
    %v95 = vld [vmem:[#allocation2 + $0x78] sm:$0xff]
    %v96 = vld [vmem:[#allocation2 + $0x80] sm:$0xff]
    %v97 = vld [vmem:[#allocation2 + $0x88] sm:$0xff]
    %v98 = vld [vmem:[#allocation2 + $0x90] sm:$0xff]
    %v99 = vld [vmem:[#allocation2 + $0x98] sm:$0xff]
    %v100 = vld [vmem:[#allocation2 + $0xa0] sm:$0xff]
    %v101 = vld [vmem:[#allocation2 + $0xa8] sm:$0xff]
    %v102 = vld [vmem:[#allocation2 + $0xb0] sm:$0xff]
    %v103 = vld [vmem:[#allocation2 + $0xb8] sm:$0xff]
    %v104 = vld [vmem:[#allocation2 + $0xc0] sm:$0xff]
    %v105 = vld [vmem:[#allocation2 + $0xc8] sm:$0xff]
    %v106 = vld [vmem:[#allocation2 + $0xd0] sm:$0xff]
    %v107 = vld [vmem:[#allocation2 + $0xd8] sm:$0xff]
    %v108 = vld [vmem:[#allocation2 + $0xe0] sm:$0xff]
    %v109 = vld [vmem:[#allocation2 + $0xe8] sm:$0xff]
    %v110 = vld [vmem:[#allocation2 + $0xf0] sm:$0xff]
    %v111 = vld [vmem:[#allocation2 + $0xf8] sm:$0xff]
    %v112 = vld [vmem:[#allocation5] sm:$0xff]
    %v113 = vld [vmem:[#allocation5 + $0x8] sm:$0xf]
    %v114 = vld [vmem:[#allocation5 + $0xc] sm:$0xff]
    %v115 = vld [vmem:[#allocation5 + $0x14] sm:$0xf]
    %v116 = vld [vmem:[#allocation5 + $0x18] sm:$0xff]
    %v117 = vld [vmem:[#allocation5 + $0x20] sm:$0xf]
    %v118 = vld [vmem:[#allocation5 + $0x24] sm:$0xff]
    %v119 = vld [vmem:[#allocation5 + $0x2c] sm:$0xf]
    %v120 = vld [vmem:[#allocation5 + $0x30] sm:$0xff]
    %v121 = vld [vmem:[#allocation5 + $0x38] sm:$0xf]
    %v122 = vld [vmem:[#allocation5 + $0x3c] sm:$0xff]
    %v123 = vld [vmem:[#allocation5 + $0x44] sm:$0xf]
    %v124 = vld [vmem:[#allocation5 + $0x48] sm:$0xff]
    %v125 = vld [vmem:[#allocation5 + $0x50] sm:$0xf]
    %v126 = vld [vmem:[#allocation5 + $0x54] sm:$0xff]
    %v127 = vld [vmem:[#allocation5 + $0x5c] sm:$0xf]
    %v128 = vld [vmem:[#allocation5 + $0x60] sm:$0xff]
    %v129 = vld [vmem:[#allocation5 + $0x68] sm:$0xf]
    %v130 = vld [vmem:[#allocation5 + $0x6c] sm:$0xff]
    %v131 = vld [vmem:[#allocation5 + $0x74] sm:$0xf]
    %v132 = vld [vmem:[#allocation5 + $0x78] sm:$0xff]
    %v133 = vld [vmem:[#allocation5 + $0x80] sm:$0xf]
    %v134 = vld [vmem:[#allocation5 + $0x84] sm:$0xff]
    %v135 = vld [vmem:[#allocation5 + $0x8c] sm:$0xf]
    %v136 = vld [vmem:[#allocation5 + $0x90] sm:$0xff]
    %v137 = vld [vmem:[#allocation5 + $0x98] sm:$0xf]
    %v138 = vld [vmem:[#allocation5 + $0x9c] sm:$0xff]
    %v139 = vld [vmem:[#allocation5 + $0xa4] sm:$0xf]
    %v140 = vld [vmem:[#allocation5 + $0xa8] sm:$0xff]
    %v141 = vld [vmem:[#allocation5 + $0xb0] sm:$0xf]
    %v142 = vld [vmem:[#allocation5 + $0xb4] sm:$0xff]
    %v143 = vld [vmem:[#allocation5 + $0xbc] sm:$0xf]
    %v144 = vld [vmem:[#allocation5 + $0xc0] sm:$0xff]
    %v145 = vld [vmem:[#allocation5 + $0xc8] sm:$0xf]
    %v146 = vld [vmem:[#allocation5 + $0xcc] sm:$0xff]
    %v147 = vld [vmem:[#allocation5 + $0xd4] sm:$0xf]
    %v148 = vld [vmem:[#allocation5 + $0xd8] sm:$0xff]
    %v149 = vld [vmem:[#allocation5 + $0xe0] sm:$0xf]
    %v150 = vld [vmem:[#allocation5 + $0xe4] sm:$0xff]
    %v151 = vld [vmem:[#allocation5 + $0xec] sm:$0xf]
    %v152 = vld [vmem:[#allocation5 + $0xf0] sm:$0xff]
    %v153 = vld [vmem:[#allocation5 + $0xf8] sm:$0xf]
    %v154 = vld [vmem:[#allocation5 + $0xfc] sm:$0xff]
    %v155 = vld [vmem:[#allocation5 + $0x104] sm:$0xf]
    %v156 = vld [vmem:[#allocation5 + $0x108] sm:$0xff]
    %v157 = vld [vmem:[#allocation5 + $0x110] sm:$0xf]
    %v158 = vld [vmem:[#allocation5 + $0x114] sm:$0xff]
    %v159 = vld [vmem:[#allocation5 + $0x11c] sm:$0xf]
    %v160 = vld [vmem:[#allocation5 + $0x120] sm:$0xff]
    %v161 = vld [vmem:[#allocation5 + $0x128] sm:$0xf]
    %v162 = vld [vmem:[#allocation5 + $0x12c] sm:$0xff]
    %v163 = vld [vmem:[#allocation5 + $0x134] sm:$0xf]
    %v164 = vld [vmem:[#allocation5 + $0x138] sm:$0xff]
    %v165 = vld [vmem:[#allocation5 + $0x140] sm:$0xf]
    %v166 = vld [vmem:[#allocation5 + $0x144] sm:$0xff]
    %v167 = vld [vmem:[#allocation5 + $0x14c] sm:$0xf]
    %v168 = vld [vmem:[#allocation5 + $0x150] sm:$0xff]
    %v169 = vld [vmem:[#allocation5 + $0x158] sm:$0xf]
    %v170 = vld [vmem:[#allocation5 + $0x15c] sm:$0xff]
    %v171 = vld [vmem:[#allocation5 + $0x164] sm:$0xf]
    %v172 = vld [vmem:[#allocation5 + $0x168] sm:$0xff]
    %v173 = vld [vmem:[#allocation5 + $0x170] sm:$0xf]
    %v174 = vld [vmem:[#allocation5 + $0x174] sm:$0xff]
    %v175 = vld [vmem:[#allocation5 + $0x17c] sm:$0xf]
    %v176 = vld [vmem:[%s2] sm:$0x7]
    %v178 = vlaneseq
    %v179 = vshrl.u32 %v178, 7
    %v180 = vsub.s32 0, %v179
    %v181 = vrot.slane %v176, %v180
    %v182 = vlaneseq
    %v183 = vshrl.u32 %v182, 7
    %v184 = vsub.s32 1, %v183
    %v185 = vrot.slane %v176, %v184
    %v186 = vlaneseq
    %v187 = vshrl.u32 %v186, 7
    %v188 = vsub.s32 2, %v187
    %v189 = vrot.slane %v176, %v188
    %v225 = vunpack.c.l.b16 %v80
    %v226 = vunpack.c.h.b16 %v80
    %v227 = vunpack.c.l.b16 %v81
    %v228 = vunpack.c.h.b16 %v81
    %v229 = vunpack.c.l.b16 %v82
    %v230 = vunpack.c.h.b16 %v82
    %v231 = vunpack.c.l.b16 %v83
    %v232 = vunpack.c.h.b16 %v83
    %v233 = vunpack.c.l.b16 %v84
    %v234 = vunpack.c.h.b16 %v84
    %v235 = vunpack.c.l.b16 %v85
    %v236 = vunpack.c.h.b16 %v85
    %v237 = vunpack.c.l.b16 %v86
    %v238 = vunpack.c.h.b16 %v86
    %v239 = vunpack.c.l.b16 %v87
    %v240 = vunpack.c.h.b16 %v87
    %v241 = vunpack.c.l.b16 %v88
    %v242 = vunpack.c.h.b16 %v88
    %v243 = vunpack.c.l.b16 %v89
    %v244 = vunpack.c.h.b16 %v89
    %v245 = vunpack.c.l.b16 %v90
    %v246 = vunpack.c.h.b16 %v90
    %v247 = vunpack.c.l.b16 %v91
    %v248 = vunpack.c.h.b16 %v91
    %v249 = vunpack.c.l.b16 %v92
    %v250 = vunpack.c.h.b16 %v92
    %v251 = vunpack.c.l.b16 %v93
    %v252 = vunpack.c.h.b16 %v93
    %v253 = vunpack.c.l.b16 %v94
    %v254 = vunpack.c.h.b16 %v94
    %v255 = vunpack.c.l.b16 %v95
    %v256 = vunpack.c.h.b16 %v95
    %v257 = vunpack.c.l.b16 %v96
    %v258 = vunpack.c.h.b16 %v96
    %v259 = vunpack.c.l.b16 %v97
    %v260 = vunpack.c.h.b16 %v97
    %v261 = vunpack.c.l.b16 %v98
    %v262 = vunpack.c.h.b16 %v98
    %v263 = vunpack.c.l.b16 %v99
    %v264 = vunpack.c.h.b16 %v99
    %v265 = vunpack.c.l.b16 %v100
    %v266 = vunpack.c.h.b16 %v100
    %v267 = vunpack.c.l.b16 %v101
    %v268 = vunpack.c.h.b16 %v101
    %v269 = vunpack.c.l.b16 %v102
    %v270 = vunpack.c.h.b16 %v102
    %v271 = vunpack.c.l.b16 %v103
    %v272 = vunpack.c.h.b16 %v103
    %v273 = vunpack.c.l.b16 %v104
    %v274 = vunpack.c.h.b16 %v104
    %v275 = vunpack.c.l.b16 %v105
    %v276 = vunpack.c.h.b16 %v105
    %v277 = vunpack.c.l.b16 %v106
    %v278 = vunpack.c.h.b16 %v106
    %v279 = vunpack.c.l.b16 %v107
    %v280 = vunpack.c.h.b16 %v107
    %v281 = vunpack.c.l.b16 %v108
    %v282 = vunpack.c.h.b16 %v108
    %v283 = vunpack.c.l.b16 %v109
    %v284 = vunpack.c.h.b16 %v109
    %v285 = vunpack.c.l.b16 %v110
    %v286 = vunpack.c.h.b16 %v110
    %v287 = vunpack.c.l.b16 %v111
    %v288 = vunpack.c.h.b16 %v111
    %v289 = vpack.c.b16 %v227, %v225
    %v290 = vpack.c.b16 %v228, %v226
    %v291 = vpack.c.b16 %v231, %v229
    %v292 = vpack.c.b16 %v232, %v230
    %v293 = vpack.c.b16 %v235, %v233
    %v294 = vpack.c.b16 %v236, %v234
    %v295 = vpack.c.b16 %v239, %v237
    %v296 = vpack.c.b16 %v240, %v238
    %v297 = vpack.c.b16 %v243, %v241
    %v298 = vpack.c.b16 %v244, %v242
    %v299 = vpack.c.b16 %v247, %v245
    %v300 = vpack.c.b16 %v248, %v246
    %v301 = vpack.c.b16 %v251, %v249
    %v302 = vpack.c.b16 %v252, %v250
    %v303 = vpack.c.b16 %v255, %v253
    %v304 = vpack.c.b16 %v256, %v254
    %v305 = vpack.c.b16 %v259, %v257
    %v306 = vpack.c.b16 %v260, %v258
    %v307 = vpack.c.b16 %v263, %v261
    %v308 = vpack.c.b16 %v264, %v262
    %v309 = vpack.c.b16 %v267, %v265
    %v310 = vpack.c.b16 %v268, %v266
    %v311 = vpack.c.b16 %v271, %v269
    %v312 = vpack.c.b16 %v272, %v270
    %v313 = vpack.c.b16 %v275, %v273
    %v314 = vpack.c.b16 %v276, %v274
    %v315 = vpack.c.b16 %v279, %v277
    %v316 = vpack.c.b16 %v280, %v278
    %v317 = vpack.c.b16 %v283, %v281
    %v318 = vpack.c.b16 %v284, %v282
    %v319 = vpack.c.b16 %v287, %v285
    %v320 = vpack.c.b16 %v288, %v286
    %v417 = vunpack.c.l.b16 %v112
    %v418 = vunpack.c.h.b16 %v112
    %v419 = vunpack.c.l.b16 %v113
    %v420 = vunpack.c.l.b16 %v114
    %v421 = vunpack.c.h.b16 %v114
    %v422 = vunpack.c.l.b16 %v115
    %v423 = vunpack.c.l.b16 %v116
    %v424 = vunpack.c.h.b16 %v116
    %v425 = vunpack.c.l.b16 %v117
    %v426 = vunpack.c.l.b16 %v118
    %v427 = vunpack.c.h.b16 %v118
    %v428 = vunpack.c.l.b16 %v119
    %v429 = vunpack.c.l.b16 %v120
    %v430 = vunpack.c.h.b16 %v120
    %v431 = vunpack.c.l.b16 %v121
    %v432 = vunpack.c.l.b16 %v122
    %v433 = vunpack.c.h.b16 %v122
    %v434 = vunpack.c.l.b16 %v123
    %v435 = vunpack.c.l.b16 %v124
    %v436 = vunpack.c.h.b16 %v124
    %v437 = vunpack.c.l.b16 %v125
    %v438 = vunpack.c.l.b16 %v126
    %v439 = vunpack.c.h.b16 %v126
    %v440 = vunpack.c.l.b16 %v127
    %v441 = vunpack.c.l.b16 %v128
    %v442 = vunpack.c.h.b16 %v128
    %v443 = vunpack.c.l.b16 %v129
    %v444 = vunpack.c.l.b16 %v130
    %v445 = vunpack.c.h.b16 %v130
    %v446 = vunpack.c.l.b16 %v131
    %v447 = vunpack.c.l.b16 %v132
    %v448 = vunpack.c.h.b16 %v132
    %v449 = vunpack.c.l.b16 %v133
    %v450 = vunpack.c.l.b16 %v134
    %v451 = vunpack.c.h.b16 %v134
    %v452 = vunpack.c.l.b16 %v135
    %v453 = vunpack.c.l.b16 %v136
    %v454 = vunpack.c.h.b16 %v136
    %v455 = vunpack.c.l.b16 %v137
    %v456 = vunpack.c.l.b16 %v138
    %v457 = vunpack.c.h.b16 %v138
    %v458 = vunpack.c.l.b16 %v139
    %v459 = vunpack.c.l.b16 %v140
    %v460 = vunpack.c.h.b16 %v140
    %v461 = vunpack.c.l.b16 %v141
    %v462 = vunpack.c.l.b16 %v142
    %v463 = vunpack.c.h.b16 %v142
    %v464 = vunpack.c.l.b16 %v143
    %v465 = vunpack.c.l.b16 %v144
    %v466 = vunpack.c.h.b16 %v144
    %v467 = vunpack.c.l.b16 %v145
    %v468 = vunpack.c.l.b16 %v146
    %v469 = vunpack.c.h.b16 %v146
    %v470 = vunpack.c.l.b16 %v147
    %v471 = vunpack.c.l.b16 %v148
    %v472 = vunpack.c.h.b16 %v148
    %v473 = vunpack.c.l.b16 %v149
    %v474 = vunpack.c.l.b16 %v150
    %v475 = vunpack.c.h.b16 %v150
    %v476 = vunpack.c.l.b16 %v151
    %v477 = vunpack.c.l.b16 %v152
    %v478 = vunpack.c.h.b16 %v152
    %v479 = vunpack.c.l.b16 %v153
    %v480 = vunpack.c.l.b16 %v154
    %v481 = vunpack.c.h.b16 %v154
    %v482 = vunpack.c.l.b16 %v155
    %v483 = vunpack.c.l.b16 %v156
    %v484 = vunpack.c.h.b16 %v156
    %v485 = vunpack.c.l.b16 %v157
    %v486 = vunpack.c.l.b16 %v158
    %v487 = vunpack.c.h.b16 %v158
    %v488 = vunpack.c.l.b16 %v159
    %v489 = vunpack.c.l.b16 %v160
    %v490 = vunpack.c.h.b16 %v160
    %v491 = vunpack.c.l.b16 %v161
    %v492 = vunpack.c.l.b16 %v162
    %v493 = vunpack.c.h.b16 %v162
    %v494 = vunpack.c.l.b16 %v163
    %v495 = vunpack.c.l.b16 %v164
    %v496 = vunpack.c.h.b16 %v164
    %v497 = vunpack.c.l.b16 %v165
    %v498 = vunpack.c.l.b16 %v166
    %v499 = vunpack.c.h.b16 %v166
    %v500 = vunpack.c.l.b16 %v167
    %v501 = vunpack.c.l.b16 %v168
    %v502 = vunpack.c.h.b16 %v168
    %v503 = vunpack.c.l.b16 %v169
    %v504 = vunpack.c.l.b16 %v170
    %v505 = vunpack.c.h.b16 %v170
    %v506 = vunpack.c.l.b16 %v171
    %v507 = vunpack.c.l.b16 %v172
    %v508 = vunpack.c.h.b16 %v172
    %v509 = vunpack.c.l.b16 %v173
    %v510 = vunpack.c.l.b16 %v174
    %v511 = vunpack.c.h.b16 %v174
    %v512 = vunpack.c.l.b16 %v175
    %v513 = vpack.c.b16 %v420, %v417
    %v514 = vpack.c.b16 %v421, %v418
    %v515 = vpack.c.b16 %v422, %v419
    %v516 = vpack.c.b16 %v426, %v423
    %v517 = vpack.c.b16 %v427, %v424
    %v518 = vpack.c.b16 %v428, %v425
    %v519 = vpack.c.b16 %v432, %v429
    %v520 = vpack.c.b16 %v433, %v430
    %v521 = vpack.c.b16 %v434, %v431
    %v522 = vpack.c.b16 %v438, %v435
    %v523 = vpack.c.b16 %v439, %v436
    %v524 = vpack.c.b16 %v440, %v437
    %v525 = vpack.c.b16 %v444, %v441
    %v526 = vpack.c.b16 %v445, %v442
    %v527 = vpack.c.b16 %v446, %v443
    %v528 = vpack.c.b16 %v450, %v447
    %v529 = vpack.c.b16 %v451, %v448
    %v530 = vpack.c.b16 %v452, %v449
    %v531 = vpack.c.b16 %v456, %v453
    %v532 = vpack.c.b16 %v457, %v454
    %v533 = vpack.c.b16 %v458, %v455
    %v534 = vpack.c.b16 %v462, %v459
    %v535 = vpack.c.b16 %v463, %v460
    %v536 = vpack.c.b16 %v464, %v461
    %v537 = vpack.c.b16 %v468, %v465
    %v538 = vpack.c.b16 %v469, %v466
    %v539 = vpack.c.b16 %v470, %v467
    %v540 = vpack.c.b16 %v474, %v471
    %v541 = vpack.c.b16 %v475, %v472
    %v542 = vpack.c.b16 %v476, %v473
    %v543 = vpack.c.b16 %v480, %v477
    %v544 = vpack.c.b16 %v481, %v478
    %v545 = vpack.c.b16 %v482, %v479
    %v546 = vpack.c.b16 %v486, %v483
    %v547 = vpack.c.b16 %v487, %v484
    %v548 = vpack.c.b16 %v488, %v485
    %v549 = vpack.c.b16 %v492, %v489
    %v550 = vpack.c.b16 %v493, %v490
    %v551 = vpack.c.b16 %v494, %v491
    %v552 = vpack.c.b16 %v498, %v495
    %v553 = vpack.c.b16 %v499, %v496
    %v554 = vpack.c.b16 %v500, %v497
    %v555 = vpack.c.b16 %v504, %v501
    %v556 = vpack.c.b16 %v505, %v502
    %v557 = vpack.c.b16 %v506, %v503
    %v558 = vpack.c.b16 %v510, %v507
    %v559 = vpack.c.b16 %v511, %v508
    %v560 = vpack.c.b16 %v512, %v509
    %609 = vmatprep.subr.bf16.mxu0 %v514
    %610 = vmatpush1.bf16.msra.mxu0 %v513
    %611 = vmatprep.subr.bf16.mxu0 %v517
    %612 = vmatpush1.bf16.msra.mxu0 %v516
    %613 = vmatprep.subr.bf16.mxu0 %v520
    %614 = vmatpush1.bf16.msra.mxu0 %v519
    %615 = vmatprep.subr.bf16.mxu0 %v523
    %616 = vmatpush1.bf16.msra.mxu0 %v522
    %617 = vmatprep.subr.bf16.mxu0 %v526
    %618 = vmatpush1.bf16.msra.mxu0 %v525
    %619 = vmatprep.subr.bf16.mxu0 %v529
    %620 = vmatpush1.bf16.msra.mxu0 %v528
    %621 = vmatprep.subr.bf16.mxu0 %v532
    %622 = vmatpush1.bf16.msra.mxu0 %v531
    %623 = vmatprep.subr.bf16.mxu0 %v535
    %624 = vmatpush1.bf16.msra.mxu0 %v534
    %625 = vmatprep.subr.bf16.mxu0 %v538
    %626 = vmatpush1.bf16.msra.mxu0 %v537
    %627 = vmatprep.subr.bf16.mxu0 %v541
    %628 = vmatpush1.bf16.msra.mxu0 %v540
    %629 = vmatprep.subr.bf16.mxu0 %v544
    %630 = vmatpush1.bf16.msra.mxu0 %v543
    %631 = vmatprep.subr.bf16.mxu0 %v547
    %632 = vmatpush1.bf16.msra.mxu0 %v546
    %633 = vmatprep.subr.bf16.mxu0 %v550
    %634 = vmatpush1.bf16.msra.mxu0 %v549
    %635 = vmatprep.subr.bf16.mxu0 %v553
    %636 = vmatpush1.bf16.msra.mxu0 %v552
    %637 = vmatprep.subr.bf16.mxu0 %v556
    %638 = vmatpush1.bf16.msra.mxu0 %v555
    %639 = vmatprep.subr.bf16.mxu0 %v559
    %640 = vmatpush1.bf16.msra.mxu0 %v558
    %641 = vmatprep.mubr.bf16.mxu0 %v290
    %642 = vmatmul.mubr.bf16.gmra.mrb[0].mxu0 %v289
    %v643 = vpop.f32.mrb[0].mxu0
    %v644 = vadd.f32 %v181, %v643
    %v645 = vpop.f32.mrb[0].mxu0
    %v646 = vadd.f32 %v185, %v645
    %v647 = vpop.f32.mrb[0].mxu0
    %v648 = vadd.f32 %v181, %v647
    %v649 = vpop.f32.mrb[0].mxu0
    %v650 = vadd.f32 %v185, %v649
    %651 = vmatprep.mubr.bf16.mxu0 %v292
    %652 = vmatmul.mubr.bf16.gmra.mrb[0].mxu0 %v291
    %v653 = vpop.f32.mrb[0].mxu0
    %v654 = vadd.f32 %v181, %v653
    %v655 = vpop.f32.mrb[0].mxu0
    %v656 = vadd.f32 %v185, %v655
    %v657 = vpop.f32.mrb[0].mxu0
    %v658 = vadd.f32 %v181, %v657
    %v659 = vpop.f32.mrb[0].mxu0
    %v660 = vadd.f32 %v185, %v659
    %661 = vmatprep.mubr.bf16.mxu0 %v294
    %662 = vmatmul.mubr.bf16.gmra.mrb[0].mxu0 %v293
    %v663 = vpop.f32.mrb[0].mxu0
    %v664 = vadd.f32 %v181, %v663
    %v665 = vpop.f32.mrb[0].mxu0
    %v666 = vadd.f32 %v185, %v665
    %v667 = vpop.f32.mrb[0].mxu0
    %v668 = vadd.f32 %v181, %v667
    %v669 = vpop.f32.mrb[0].mxu0
    %v670 = vadd.f32 %v185, %v669
    %671 = vmatprep.mubr.bf16.mxu0 %v296
    %672 = vmatmul.mubr.bf16.gmra.mrb[0].mxu0 %v295
    %v673 = vpop.f32.mrb[0].mxu0
    %v674 = vadd.f32 %v181, %v673
    %v675 = vpop.f32.mrb[0].mxu0
    %v676 = vadd.f32 %v185, %v675
    %v677 = vpop.f32.mrb[0].mxu0
    %v678 = vadd.f32 %v181, %v677
    %v679 = vpop.f32.mrb[0].mxu0
    %v680 = vadd.f32 %v185, %v679
    %681 = vmatprep.mubr.bf16.mxu0 %v298
    %682 = vmatmul.mubr.bf16.gmra.mrb[0].mxu0 %v297
    %v683 = vpop.f32.mrb[0].mxu0
    %v684 = vadd.f32 %v181, %v683
    %v685 = vpop.f32.mrb[0].mxu0
    %v686 = vadd.f32 %v185, %v685
    %v687 = vpop.f32.mrb[0].mxu0
    %v688 = vadd.f32 %v181, %v687
    %v689 = vpop.f32.mrb[0].mxu0
    %v690 = vadd.f32 %v185, %v689
    %691 = vmatprep.mubr.bf16.mxu0 %v300
    %692 = vmatmul.mubr.bf16.gmra.mrb[0].mxu0 %v299
    %v693 = vpop.f32.mrb[0].mxu0
    %v694 = vadd.f32 %v181, %v693
    %v695 = vpop.f32.mrb[0].mxu0
    %v696 = vadd.f32 %v185, %v695
    %v697 = vpop.f32.mrb[0].mxu0
    %v698 = vadd.f32 %v181, %v697
    %v699 = vpop.f32.mrb[0].mxu0
    %v700 = vadd.f32 %v185, %v699
    %701 = vmatprep.mubr.bf16.mxu0 %v302
    %702 = vmatmul.mubr.bf16.gmra.mrb[0].mxu0 %v301
    %v703 = vpop.f32.mrb[0].mxu0
    %v704 = vadd.f32 %v181, %v703
    %v705 = vpop.f32.mrb[0].mxu0
    %v706 = vadd.f32 %v185, %v705
    %v707 = vpop.f32.mrb[0].mxu0
    %v708 = vadd.f32 %v181, %v707
    %v709 = vpop.f32.mrb[0].mxu0
    %v710 = vadd.f32 %v185, %v709
    %711 = vmatprep.mubr.bf16.mxu0 %v304
    %712 = vmatmul.mubr.bf16.gmra.mrb[0].mxu0 %v303
    %v713 = vpop.f32.mrb[0].mxu0
    %v714 = vadd.f32 %v181, %v713
    %v715 = vpop.f32.mrb[0].mxu0
    %v716 = vadd.f32 %v185, %v715
    %v717 = vpop.f32.mrb[0].mxu0
    %v718 = vadd.f32 %v181, %v717
    %v719 = vpop.f32.mrb[0].mxu0
    %v720 = vadd.f32 %v185, %v719
    %721 = vmatprep.mubr.bf16.mxu0 %v306
    %722 = vmatmul.mubr.bf16.gmra.mrb[0].mxu0 %v305
    %v723 = vpop.f32.mrb[0].mxu0
    %v724 = vadd.f32 %v181, %v723
    %v725 = vpop.f32.mrb[0].mxu0
    %v726 = vadd.f32 %v185, %v725
    %v727 = vpop.f32.mrb[0].mxu0
    %v728 = vadd.f32 %v181, %v727
    %v729 = vpop.f32.mrb[0].mxu0
    %v730 = vadd.f32 %v185, %v729
    %731 = vmatprep.mubr.bf16.mxu0 %v308
    %732 = vmatmul.mubr.bf16.gmra.mrb[0].mxu0 %v307
    %v733 = vpop.f32.mrb[0].mxu0
    %v734 = vadd.f32 %v181, %v733
    %v735 = vpop.f32.mrb[0].mxu0
    %v736 = vadd.f32 %v185, %v735
    %v737 = vpop.f32.mrb[0].mxu0
    %v738 = vadd.f32 %v181, %v737
    %v739 = vpop.f32.mrb[0].mxu0
    %v740 = vadd.f32 %v185, %v739
    %741 = vmatprep.mubr.bf16.mxu0 %v310
    %742 = vmatmul.mubr.bf16.gmra.mrb[0].mxu0 %v309
    %v743 = vpop.f32.mrb[0].mxu0
    %v744 = vadd.f32 %v181, %v743
    %v745 = vpop.f32.mrb[0].mxu0
    %v746 = vadd.f32 %v185, %v745
    %v747 = vpop.f32.mrb[0].mxu0
    %v748 = vadd.f32 %v181, %v747
    %v749 = vpop.f32.mrb[0].mxu0
    %v750 = vadd.f32 %v185, %v749
    %751 = vmatprep.mubr.bf16.mxu0 %v312
    %752 = vmatmul.mubr.bf16.gmra.mrb[0].mxu0 %v311
    %v753 = vpop.f32.mrb[0].mxu0
    %v754 = vadd.f32 %v181, %v753
    %v755 = vpop.f32.mrb[0].mxu0
    %v756 = vadd.f32 %v185, %v755
    %v757 = vpop.f32.mrb[0].mxu0
    %v758 = vadd.f32 %v181, %v757
    %v759 = vpop.f32.mrb[0].mxu0
    %v760 = vadd.f32 %v185, %v759
    %761 = vmatprep.mubr.bf16.mxu0 %v314
    %762 = vmatmul.mubr.bf16.gmra.mrb[0].mxu0 %v313
    %v763 = vpop.f32.mrb[0].mxu0
    %v764 = vadd.f32 %v181, %v763
    %v765 = vpop.f32.mrb[0].mxu0
    %v766 = vadd.f32 %v185, %v765
    %v767 = vpop.f32.mrb[0].mxu0
    %v768 = vadd.f32 %v181, %v767
    %v769 = vpop.f32.mrb[0].mxu0
    %v770 = vadd.f32 %v185, %v769
    %771 = vmatprep.mubr.bf16.mxu0 %v316
    %772 = vmatmul.mubr.bf16.gmra.mrb[0].mxu0 %v315
    %v773 = vpop.f32.mrb[0].mxu0
    %v774 = vadd.f32 %v181, %v773
    %v775 = vpop.f32.mrb[0].mxu0
    %v776 = vadd.f32 %v185, %v775
    %v777 = vpop.f32.mrb[0].mxu0
    %v778 = vadd.f32 %v181, %v777
    %v779 = vpop.f32.mrb[0].mxu0
    %v780 = vadd.f32 %v185, %v779
    %781 = vmatprep.mubr.bf16.mxu0 %v318
    %782 = vmatmul.mubr.bf16.gmra.mrb[0].mxu0 %v317
    %v783 = vpop.f32.mrb[0].mxu0
    %v784 = vadd.f32 %v181, %v783
    %v785 = vpop.f32.mrb[0].mxu0
    %v786 = vadd.f32 %v185, %v785
    %v787 = vpop.f32.mrb[0].mxu0
    %v788 = vadd.f32 %v181, %v787
    %v789 = vpop.f32.mrb[0].mxu0
    %v790 = vadd.f32 %v185, %v789
    %791 = vmatprep.mubr.bf16.mxu0 %v320
    %792 = vmatmul.mubr.bf16.gmra.mrb[0].mxu0 %v319
    %v793 = vpop.f32.mrb[0].mxu0
    %v794 = vadd.f32 %v181, %v793
    %v795 = vpop.f32.mrb[0].mxu0
    %v796 = vadd.f32 %v185, %v795
    %v797 = vpop.f32.mrb[0].mxu0
    %v798 = vadd.f32 %v181, %v797
    %v799 = vpop.f32.mrb[0].mxu0
    %v800 = vadd.f32 %v185, %v799
    %801 = vdwg.mxu0
    %802 = vmatprep.subr.bf16.mxu0 0
    %803 = vmatpush1.bf16.msra.mxu0 %v515
    %804 = vmatprep.subr.bf16.mxu0 0
    %805 = vmatpush1.bf16.msra.mxu0 %v518
    %806 = vmatprep.subr.bf16.mxu0 0
    %807 = vmatpush1.bf16.msra.mxu0 %v521
    %808 = vmatprep.subr.bf16.mxu0 0
    %809 = vmatpush1.bf16.msra.mxu0 %v524
    %810 = vmatprep.subr.bf16.mxu0 0
    %811 = vmatpush1.bf16.msra.mxu0 %v527
    %812 = vmatprep.subr.bf16.mxu0 0
    %813 = vmatpush1.bf16.msra.mxu0 %v530
    %814 = vmatprep.subr.bf16.mxu0 0
    %815 = vmatpush1.bf16.msra.mxu0 %v533
    %816 = vmatprep.subr.bf16.mxu0 0
    %817 = vmatpush1.bf16.msra.mxu0 %v536
    %818 = vmatprep.subr.bf16.mxu0 0
    %819 = vmatpush1.bf16.msra.mxu0 %v539
    %820 = vmatprep.subr.bf16.mxu0 0
    %821 = vmatpush1.bf16.msra.mxu0 %v542
    %822 = vmatprep.subr.bf16.mxu0 0
    %823 = vmatpush1.bf16.msra.mxu0 %v545
    %824 = vmatprep.subr.bf16.mxu0 0
    %825 = vmatpush1.bf16.msra.mxu0 %v548
    %826 = vmatprep.subr.bf16.mxu0 0
    %827 = vmatpush1.bf16.msra.mxu0 %v551
    %828 = vmatprep.subr.bf16.mxu0 0
    %829 = vmatpush1.bf16.msra.mxu0 %v554
    %830 = vmatprep.subr.bf16.mxu0 0
    %831 = vmatpush1.bf16.msra.mxu0 %v557
    %832 = vmatprep.subr.bf16.mxu0 0
    %833 = vmatpush1.bf16.msra.mxu0 %v560
    %834 = vmatprep.mubr.bf16.mxu0 %v290
    %835 = vmatmul.mubr.bf16.gmra.mrb[0].mxu0 %v289
    %v836 = vpop.f32.mrb[0].mxu0
    %v837 = vadd.f32 %v189, %v836
    %v838 = vpop.f32.mrb[0].mxu0
    %v839 = vpop.f32.mrb[0].mxu0
    %v840 = vadd.f32 %v189, %v839
    %v841 = vpop.f32.mrb[0].mxu0
    %842 = vmatprep.mubr.bf16.mxu0 %v292
    %843 = vmatmul.mubr.bf16.gmra.mrb[0].mxu0 %v291
    %v844 = vpop.f32.mrb[0].mxu0
    %v845 = vadd.f32 %v189, %v844
    %v846 = vpop.f32.mrb[0].mxu0
    %v847 = vpop.f32.mrb[0].mxu0
    %v848 = vadd.f32 %v189, %v847
    %v849 = vpop.f32.mrb[0].mxu0
    %850 = vmatprep.mubr.bf16.mxu0 %v294
    %851 = vmatmul.mubr.bf16.gmra.mrb[0].mxu0 %v293
    %v852 = vpop.f32.mrb[0].mxu0
    %v853 = vadd.f32 %v189, %v852
    %v854 = vpop.f32.mrb[0].mxu0
    %v855 = vpop.f32.mrb[0].mxu0
    %v856 = vadd.f32 %v189, %v855
    %v857 = vpop.f32.mrb[0].mxu0
    %858 = vmatprep.mubr.bf16.mxu0 %v296
    %859 = vmatmul.mubr.bf16.gmra.mrb[0].mxu0 %v295
    %v860 = vpop.f32.mrb[0].mxu0
    %v861 = vadd.f32 %v189, %v860
    %v862 = vpop.f32.mrb[0].mxu0
    %v863 = vpop.f32.mrb[0].mxu0
    %v864 = vadd.f32 %v189, %v863
    %v865 = vpop.f32.mrb[0].mxu0
    %866 = vmatprep.mubr.bf16.mxu0 %v298
    %867 = vmatmul.mubr.bf16.gmra.mrb[0].mxu0 %v297
    %v868 = vpop.f32.mrb[0].mxu0
    %v869 = vadd.f32 %v189, %v868
    %v870 = vpop.f32.mrb[0].mxu0
    %v871 = vpop.f32.mrb[0].mxu0
    %v872 = vadd.f32 %v189, %v871
    %v873 = vpop.f32.mrb[0].mxu0
    %874 = vmatprep.mubr.bf16.mxu0 %v300
    %875 = vmatmul.mubr.bf16.gmra.mrb[0].mxu0 %v299
    %v876 = vpop.f32.mrb[0].mxu0
    %v877 = vadd.f32 %v189, %v876
    %v878 = vpop.f32.mrb[0].mxu0
    %v879 = vpop.f32.mrb[0].mxu0
    %v880 = vadd.f32 %v189, %v879
    %v881 = vpop.f32.mrb[0].mxu0
    %882 = vmatprep.mubr.bf16.mxu0 %v302
    %883 = vmatmul.mubr.bf16.gmra.mrb[0].mxu0 %v301
    %v884 = vpop.f32.mrb[0].mxu0
    %v885 = vadd.f32 %v189, %v884
    %v886 = vpop.f32.mrb[0].mxu0
    %v887 = vpop.f32.mrb[0].mxu0
    %v888 = vadd.f32 %v189, %v887
    %v889 = vpop.f32.mrb[0].mxu0
    %890 = vmatprep.mubr.bf16.mxu0 %v304
    %891 = vmatmul.mubr.bf16.gmra.mrb[0].mxu0 %v303
    %v892 = vpop.f32.mrb[0].mxu0
    %v893 = vadd.f32 %v189, %v892
    %v894 = vpop.f32.mrb[0].mxu0
    %v895 = vpop.f32.mrb[0].mxu0
    %v896 = vadd.f32 %v189, %v895
    %v897 = vpop.f32.mrb[0].mxu0
    %898 = vmatprep.mubr.bf16.mxu0 %v306
    %899 = vmatmul.mubr.bf16.gmra.mrb[0].mxu0 %v305
    %v900 = vpop.f32.mrb[0].mxu0
    %v901 = vadd.f32 %v189, %v900
    %v902 = vpop.f32.mrb[0].mxu0
    %v903 = vpop.f32.mrb[0].mxu0
    %v904 = vadd.f32 %v189, %v903
    %v905 = vpop.f32.mrb[0].mxu0
    %906 = vmatprep.mubr.bf16.mxu0 %v308
    %907 = vmatmul.mubr.bf16.gmra.mrb[0].mxu0 %v307
    %v908 = vpop.f32.mrb[0].mxu0
    %v909 = vadd.f32 %v189, %v908
    %v910 = vpop.f32.mrb[0].mxu0
    %v911 = vpop.f32.mrb[0].mxu0
    %v912 = vadd.f32 %v189, %v911
    %v913 = vpop.f32.mrb[0].mxu0
    %914 = vmatprep.mubr.bf16.mxu0 %v310
    %915 = vmatmul.mubr.bf16.gmra.mrb[0].mxu0 %v309
    %v916 = vpop.f32.mrb[0].mxu0
    %v917 = vadd.f32 %v189, %v916
    %v918 = vpop.f32.mrb[0].mxu0
    %v919 = vpop.f32.mrb[0].mxu0
    %v920 = vadd.f32 %v189, %v919
    %v921 = vpop.f32.mrb[0].mxu0
    %922 = vmatprep.mubr.bf16.mxu0 %v312
    %923 = vmatmul.mubr.bf16.gmra.mrb[0].mxu0 %v311
    %v924 = vpop.f32.mrb[0].mxu0
    %v925 = vadd.f32 %v189, %v924
    %v926 = vpop.f32.mrb[0].mxu0
    %v927 = vpop.f32.mrb[0].mxu0
    %v928 = vadd.f32 %v189, %v927
    %v929 = vpop.f32.mrb[0].mxu0
    %930 = vmatprep.mubr.bf16.mxu0 %v314
    %931 = vmatmul.mubr.bf16.gmra.mrb[0].mxu0 %v313
    %v932 = vpop.f32.mrb[0].mxu0
    %v933 = vadd.f32 %v189, %v932
    %v934 = vpop.f32.mrb[0].mxu0
    %v935 = vpop.f32.mrb[0].mxu0
    %v936 = vadd.f32 %v189, %v935
    %v937 = vpop.f32.mrb[0].mxu0
    %938 = vmatprep.mubr.bf16.mxu0 %v316
    %939 = vmatmul.mubr.bf16.gmra.mrb[0].mxu0 %v315
    %v940 = vpop.f32.mrb[0].mxu0
    %v941 = vadd.f32 %v189, %v940
    %v942 = vpop.f32.mrb[0].mxu0
    %v943 = vpop.f32.mrb[0].mxu0
    %v944 = vadd.f32 %v189, %v943
    %v945 = vpop.f32.mrb[0].mxu0
    %946 = vmatprep.mubr.bf16.mxu0 %v318
    %947 = vmatmul.mubr.bf16.gmra.mrb[0].mxu0 %v317
    %v948 = vpop.f32.mrb[0].mxu0
    %v949 = vadd.f32 %v189, %v948
    %v950 = vpop.f32.mrb[0].mxu0
    %v951 = vpop.f32.mrb[0].mxu0
    %v952 = vadd.f32 %v189, %v951
    %v953 = vpop.f32.mrb[0].mxu0
    %954 = vmatprep.mubr.bf16.mxu0 %v320
    %955 = vmatmul.mubr.bf16.gmra.mrb[0].mxu0 %v319
    %v956 = vpop.f32.mrb[0].mxu0
    %v957 = vadd.f32 %v189, %v956
    %v958 = vpop.f32.mrb[0].mxu0
    %v959 = vpop.f32.mrb[0].mxu0
    %v960 = vadd.f32 %v189, %v959
    %v961 = vpop.f32.mrb[0].mxu0
    %962 = vdwg.mxu0
    %v963 = vmax.f32 %v644, 0.0
    %v964 = vmax.f32 %v646, 0.0
    %v965 = vmax.f32 %v837, 0.0
    %v966 = vmax.f32 %v648, 0.0
    %v967 = vmax.f32 %v650, 0.0
    %v968 = vmax.f32 %v840, 0.0
    %v969 = vmax.f32 %v654, 0.0
    %v970 = vmax.f32 %v656, 0.0
    %v971 = vmax.f32 %v845, 0.0
    %v972 = vmax.f32 %v658, 0.0
    %v973 = vmax.f32 %v660, 0.0
    %v974 = vmax.f32 %v848, 0.0
    %v975 = vmax.f32 %v664, 0.0
    %v976 = vmax.f32 %v666, 0.0
    %v977 = vmax.f32 %v853, 0.0
    %v978 = vmax.f32 %v668, 0.0
    %v979 = vmax.f32 %v670, 0.0
    %v980 = vmax.f32 %v856, 0.0
    %v981 = vmax.f32 %v674, 0.0
    %v982 = vmax.f32 %v676, 0.0
    %v983 = vmax.f32 %v861, 0.0
    %v984 = vmax.f32 %v678, 0.0
    %v985 = vmax.f32 %v680, 0.0
    %v986 = vmax.f32 %v864, 0.0
    %v987 = vmax.f32 %v684, 0.0
    %v988 = vmax.f32 %v686, 0.0
    %v989 = vmax.f32 %v869, 0.0
    %v990 = vmax.f32 %v688, 0.0
    %v991 = vmax.f32 %v690, 0.0
    %v992 = vmax.f32 %v872, 0.0
    %v993 = vmax.f32 %v694, 0.0
    %v994 = vmax.f32 %v696, 0.0
    %v995 = vmax.f32 %v877, 0.0
    %v996 = vmax.f32 %v698, 0.0
    %v997 = vmax.f32 %v700, 0.0
    %v998 = vmax.f32 %v880, 0.0
    %v999 = vmax.f32 %v704, 0.0
    %v1000 = vmax.f32 %v706, 0.0
    %v1001 = vmax.f32 %v885, 0.0
    %v1002 = vmax.f32 %v708, 0.0
    %v1003 = vmax.f32 %v710, 0.0
    %v1004 = vmax.f32 %v888, 0.0
    %v1005 = vmax.f32 %v714, 0.0
    %v1006 = vmax.f32 %v716, 0.0
    %v1007 = vmax.f32 %v893, 0.0
    %v1008 = vmax.f32 %v718, 0.0
    %v1009 = vmax.f32 %v720, 0.0
    %v1010 = vmax.f32 %v896, 0.0
    %v1011 = vmax.f32 %v724, 0.0
    %v1012 = vmax.f32 %v726, 0.0
    %v1013 = vmax.f32 %v901, 0.0
    %v1014 = vmax.f32 %v728, 0.0
    %v1015 = vmax.f32 %v730, 0.0
    %v1016 = vmax.f32 %v904, 0.0
    %v1017 = vmax.f32 %v734, 0.0
    %v1018 = vmax.f32 %v736, 0.0
    %v1019 = vmax.f32 %v909, 0.0
    %v1020 = vmax.f32 %v738, 0.0
    %v1021 = vmax.f32 %v740, 0.0
    %v1022 = vmax.f32 %v912, 0.0
    %v1023 = vmax.f32 %v744, 0.0
    %v1024 = vmax.f32 %v746, 0.0
    %v1025 = vmax.f32 %v917, 0.0
    %v1026 = vmax.f32 %v748, 0.0
    %v1027 = vmax.f32 %v750, 0.0
    %v1028 = vmax.f32 %v920, 0.0
    %v1029 = vmax.f32 %v754, 0.0
    %v1030 = vmax.f32 %v756, 0.0
    %v1031 = vmax.f32 %v925, 0.0
    %v1032 = vmax.f32 %v758, 0.0
    %v1033 = vmax.f32 %v760, 0.0
    %v1034 = vmax.f32 %v928, 0.0
    %v1035 = vmax.f32 %v764, 0.0
    %v1036 = vmax.f32 %v766, 0.0
    %v1037 = vmax.f32 %v933, 0.0
    %v1038 = vmax.f32 %v768, 0.0
    %v1039 = vmax.f32 %v770, 0.0
    %v1040 = vmax.f32 %v936, 0.0
    %v1041 = vmax.f32 %v774, 0.0
    %v1042 = vmax.f32 %v776, 0.0
    %v1043 = vmax.f32 %v941, 0.0
    %v1044 = vmax.f32 %v778, 0.0
    %v1045 = vmax.f32 %v780, 0.0
    %v1046 = vmax.f32 %v944, 0.0
    %v1047 = vmax.f32 %v784, 0.0
    %v1048 = vmax.f32 %v786, 0.0
    %v1049 = vmax.f32 %v949, 0.0
    %v1050 = vmax.f32 %v788, 0.0
    %v1051 = vmax.f32 %v790, 0.0
    %v1052 = vmax.f32 %v952, 0.0
    %v1053 = vmax.f32 %v794, 0.0
    %v1054 = vmax.f32 %v796, 0.0
    %v1055 = vmax.f32 %v957, 0.0
    %v1056 = vmax.f32 %v798, 0.0
    %v1057 = vmax.f32 %v800, 0.0
    %v1058 = vmax.f32 %v960, 0.0
    %v1059 = vld [vmem:[#allocation7] sm:$0xff]
    %v1060 = vld [vmem:[#allocation7 + $0x8] sm:$0xff]
    %v1061 = vld [vmem:[#allocation7 + $0x10] sm:$0xff]
    %v1062 = vld [vmem:[#allocation7 + $0x18] sm:$0xff]
    %v1063 = vld [vmem:[#allocation7 + $0x20] sm:$0xff]
    %v1064 = vld [vmem:[#allocation7 + $0x28] sm:$0xff]
    %v1065 = vmul.f32 %v963, %v1059
    %v1066 = vmul.f32 %v964, %v1060
    %v1067 = vmul.f32 %v965, %v1061
    %v1068 = vmul.f32 %v966, %v1062
    %v1069 = vmul.f32 %v967, %v1063
    %v1070 = vmul.f32 %v968, %v1064
    %v1071 = vmul.f32 %v969, %v1059
    %v1072 = vmul.f32 %v970, %v1060
    %v1073 = vmul.f32 %v971, %v1061
    %v1074 = vmul.f32 %v972, %v1062
    %v1075 = vmul.f32 %v973, %v1063
    %v1076 = vmul.f32 %v974, %v1064
    %v1077 = vmul.f32 %v975, %v1059
    %v1078 = vmul.f32 %v976, %v1060
    %v1079 = vmul.f32 %v977, %v1061
    %v1080 = vmul.f32 %v978, %v1062
    %v1081 = vmul.f32 %v979, %v1063
    %v1082 = vmul.f32 %v980, %v1064
    %v1083 = vmul.f32 %v981, %v1059
    %v1084 = vmul.f32 %v982, %v1060
    %v1085 = vmul.f32 %v983, %v1061
    %v1086 = vmul.f32 %v984, %v1062
    %v1087 = vmul.f32 %v985, %v1063
    %v1088 = vmul.f32 %v986, %v1064
    %v1089 = vmul.f32 %v987, %v1059
    %v1090 = vmul.f32 %v988, %v1060
    %v1091 = vmul.f32 %v989, %v1061
    %v1092 = vmul.f32 %v990, %v1062
    %v1093 = vmul.f32 %v991, %v1063
    %v1094 = vmul.f32 %v992, %v1064
    %v1095 = vmul.f32 %v993, %v1059
    %v1096 = vmul.f32 %v994, %v1060
    %v1097 = vmul.f32 %v995, %v1061
    %v1098 = vmul.f32 %v996, %v1062
    %v1099 = vmul.f32 %v997, %v1063
    %v1100 = vmul.f32 %v998, %v1064
    %v1101 = vmul.f32 %v999, %v1059
    %v1102 = vmul.f32 %v1000, %v1060
    %v1103 = vmul.f32 %v1001, %v1061
    %v1104 = vmul.f32 %v1002, %v1062
    %v1105 = vmul.f32 %v1003, %v1063
    %v1106 = vmul.f32 %v1004, %v1064
    %v1107 = vmul.f32 %v1005, %v1059
    %v1108 = vmul.f32 %v1006, %v1060
    %v1109 = vmul.f32 %v1007, %v1061
    %v1110 = vmul.f32 %v1008, %v1062
    %v1111 = vmul.f32 %v1009, %v1063
    %v1112 = vmul.f32 %v1010, %v1064
    %v1113 = vmul.f32 %v1011, %v1059
    %v1114 = vmul.f32 %v1012, %v1060
    %v1115 = vmul.f32 %v1013, %v1061
    %v1116 = vmul.f32 %v1014, %v1062
    %v1117 = vmul.f32 %v1015, %v1063
    %v1118 = vmul.f32 %v1016, %v1064
    %v1119 = vmul.f32 %v1017, %v1059
    %v1120 = vmul.f32 %v1018, %v1060
    %v1121 = vmul.f32 %v1019, %v1061
    %v1122 = vmul.f32 %v1020, %v1062
    %v1123 = vmul.f32 %v1021, %v1063
    %v1124 = vmul.f32 %v1022, %v1064
    %v1125 = vmul.f32 %v1023, %v1059
    %v1126 = vmul.f32 %v1024, %v1060
    %v1127 = vmul.f32 %v1025, %v1061
    %v1128 = vmul.f32 %v1026, %v1062
    %v1129 = vmul.f32 %v1027, %v1063
    %v1130 = vmul.f32 %v1028, %v1064
    %v1131 = vmul.f32 %v1029, %v1059
    %v1132 = vmul.f32 %v1030, %v1060
    %v1133 = vmul.f32 %v1031, %v1061
    %v1134 = vmul.f32 %v1032, %v1062
    %v1135 = vmul.f32 %v1033, %v1063
    %v1136 = vmul.f32 %v1034, %v1064
    %v1137 = vmul.f32 %v1035, %v1059
    %v1138 = vmul.f32 %v1036, %v1060
    %v1139 = vmul.f32 %v1037, %v1061
    %v1140 = vmul.f32 %v1038, %v1062
    %v1141 = vmul.f32 %v1039, %v1063
    %v1142 = vmul.f32 %v1040, %v1064
    %v1143 = vmul.f32 %v1041, %v1059
    %v1144 = vmul.f32 %v1042, %v1060
    %v1145 = vmul.f32 %v1043, %v1061
    %v1146 = vmul.f32 %v1044, %v1062
    %v1147 = vmul.f32 %v1045, %v1063
    %v1148 = vmul.f32 %v1046, %v1064
    %v1149 = vmul.f32 %v1047, %v1059
    %v1150 = vmul.f32 %v1048, %v1060
    %v1151 = vmul.f32 %v1049, %v1061
    %v1152 = vmul.f32 %v1050, %v1062
    %v1153 = vmul.f32 %v1051, %v1063
    %v1154 = vmul.f32 %v1052, %v1064
    %v1155 = vmul.f32 %v1053, %v1059
    %v1156 = vmul.f32 %v1054, %v1060
    %v1157 = vmul.f32 %v1055, %v1061
    %v1158 = vmul.f32 %v1056, %v1062
    %v1159 = vmul.f32 %v1057, %v1063
    %v1160 = vmul.f32 %v1058, %v1064
    %v1161 = vmax.f32 %v1065, %v1068
    %v1162 = vrot.slane %v1161, 4
    %v1163 = vmax.f32 %v1161, %v1162
    %v1164 = vrot.slane %v1163, 2
    %v1165 = vmax.f32 %v1163, %v1164
    %v1166 = vrot.slane %v1165, 1
    %v1167 = vmax.f32 %v1165, %v1166
    %v1168 = vmax.f32 %v1066, %v1069
    %v1169 = vrot.slane %v1168, 4
    %v1170 = vmax.f32 %v1168, %v1169
    %v1171 = vrot.slane %v1170, 2
    %v1172 = vmax.f32 %v1170, %v1171
    %v1173 = vrot.slane %v1172, 1
    %v1174 = vmax.f32 %v1172, %v1173
    %v1175 = vmax.f32 %v1067, %v1070
    %v1176 = vrot.slane %v1175, 4
    %v1177 = vmax.f32 %v1175, %v1176
    %v1178 = vrot.slane %v1177, 2
    %v1179 = vmax.f32 %v1177, %v1178
    %v1180 = vrot.slane %v1179, 1
    %v1181 = vmax.f32 %v1179, %v1180
    %v1182 = vmax.f32 %v1071, %v1074
    %v1183 = vrot.slane %v1182, 4
    %v1184 = vmax.f32 %v1182, %v1183
    %v1185 = vrot.slane %v1184, 2
    %v1186 = vmax.f32 %v1184, %v1185
    %v1187 = vrot.slane %v1186, 1
    %v1188 = vmax.f32 %v1186, %v1187
    %v1189 = vmax.f32 %v1072, %v1075
    %v1190 = vrot.slane %v1189, 4
    %v1191 = vmax.f32 %v1189, %v1190
    %v1192 = vrot.slane %v1191, 2
    %v1193 = vmax.f32 %v1191, %v1192
    %v1194 = vrot.slane %v1193, 1
    %v1195 = vmax.f32 %v1193, %v1194
    %v1196 = vmax.f32 %v1073, %v1076
    %v1197 = vrot.slane %v1196, 4
    %v1198 = vmax.f32 %v1196, %v1197
    %v1199 = vrot.slane %v1198, 2
    %v1200 = vmax.f32 %v1198, %v1199
    %v1201 = vrot.slane %v1200, 1
    %v1202 = vmax.f32 %v1200, %v1201
    %v1203 = vmax.f32 %v1077, %v1080
    %v1204 = vrot.slane %v1203, 4
    %v1205 = vmax.f32 %v1203, %v1204
    %v1206 = vrot.slane %v1205, 2
    %v1207 = vmax.f32 %v1205, %v1206
    %v1208 = vrot.slane %v1207, 1
    %v1209 = vmax.f32 %v1207, %v1208
    %v1210 = vmax.f32 %v1078, %v1081
    %v1211 = vrot.slane %v1210, 4
    %v1212 = vmax.f32 %v1210, %v1211
    %v1213 = vrot.slane %v1212, 2
    %v1214 = vmax.f32 %v1212, %v1213
    %v1215 = vrot.slane %v1214, 1
    %v1216 = vmax.f32 %v1214, %v1215
    %v1217 = vmax.f32 %v1079, %v1082
    %v1218 = vrot.slane %v1217, 4
    %v1219 = vmax.f32 %v1217, %v1218
    %v1220 = vrot.slane %v1219, 2
    %v1221 = vmax.f32 %v1219, %v1220
    %v1222 = vrot.slane %v1221, 1
    %v1223 = vmax.f32 %v1221, %v1222
    %v1224 = vmax.f32 %v1083, %v1086
    %v1225 = vrot.slane %v1224, 4
    %v1226 = vmax.f32 %v1224, %v1225
    %v1227 = vrot.slane %v1226, 2
    %v1228 = vmax.f32 %v1226, %v1227
    %v1229 = vrot.slane %v1228, 1
    %v1230 = vmax.f32 %v1228, %v1229
    %v1231 = vmax.f32 %v1084, %v1087
    %v1232 = vrot.slane %v1231, 4
    %v1233 = vmax.f32 %v1231, %v1232
    %v1234 = vrot.slane %v1233, 2
    %v1235 = vmax.f32 %v1233, %v1234
    %v1236 = vrot.slane %v1235, 1
    %v1237 = vmax.f32 %v1235, %v1236
    %v1238 = vmax.f32 %v1085, %v1088
    %v1239 = vrot.slane %v1238, 4
    %v1240 = vmax.f32 %v1238, %v1239
    %v1241 = vrot.slane %v1240, 2
    %v1242 = vmax.f32 %v1240, %v1241
    %v1243 = vrot.slane %v1242, 1
    %v1244 = vmax.f32 %v1242, %v1243
    %v1245 = vmax.f32 %v1089, %v1092
    %v1246 = vrot.slane %v1245, 4
    %v1247 = vmax.f32 %v1245, %v1246
    %v1248 = vrot.slane %v1247, 2
    %v1249 = vmax.f32 %v1247, %v1248
    %v1250 = vrot.slane %v1249, 1
    %v1251 = vmax.f32 %v1249, %v1250
    %v1252 = vmax.f32 %v1090, %v1093
    %v1253 = vrot.slane %v1252, 4
    %v1254 = vmax.f32 %v1252, %v1253
    %v1255 = vrot.slane %v1254, 2
    %v1256 = vmax.f32 %v1254, %v1255
    %v1257 = vrot.slane %v1256, 1
    %v1258 = vmax.f32 %v1256, %v1257
    %v1259 = vmax.f32 %v1091, %v1094
    %v1260 = vrot.slane %v1259, 4
    %v1261 = vmax.f32 %v1259, %v1260
    %v1262 = vrot.slane %v1261, 2
    %v1263 = vmax.f32 %v1261, %v1262
    %v1264 = vrot.slane %v1263, 1
    %v1265 = vmax.f32 %v1263, %v1264
    %v1266 = vmax.f32 %v1095, %v1098
    %v1267 = vrot.slane %v1266, 4
    %v1268 = vmax.f32 %v1266, %v1267
    %v1269 = vrot.slane %v1268, 2
    %v1270 = vmax.f32 %v1268, %v1269
    %v1271 = vrot.slane %v1270, 1
    %v1272 = vmax.f32 %v1270, %v1271
    %v1273 = vmax.f32 %v1096, %v1099
    %v1274 = vrot.slane %v1273, 4
    %v1275 = vmax.f32 %v1273, %v1274
    %v1276 = vrot.slane %v1275, 2
    %v1277 = vmax.f32 %v1275, %v1276
    %v1278 = vrot.slane %v1277, 1
    %v1279 = vmax.f32 %v1277, %v1278
    %v1280 = vmax.f32 %v1097, %v1100
    %v1281 = vrot.slane %v1280, 4
    %v1282 = vmax.f32 %v1280, %v1281
    %v1283 = vrot.slane %v1282, 2
    %v1284 = vmax.f32 %v1282, %v1283
    %v1285 = vrot.slane %v1284, 1
    %v1286 = vmax.f32 %v1284, %v1285
    %v1287 = vmax.f32 %v1101, %v1104
    %v1288 = vrot.slane %v1287, 4
    %v1289 = vmax.f32 %v1287, %v1288
    %v1290 = vrot.slane %v1289, 2
    %v1291 = vmax.f32 %v1289, %v1290
    %v1292 = vrot.slane %v1291, 1
    %v1293 = vmax.f32 %v1291, %v1292
    %v1294 = vmax.f32 %v1102, %v1105
    %v1295 = vrot.slane %v1294, 4
    %v1296 = vmax.f32 %v1294, %v1295
    %v1297 = vrot.slane %v1296, 2
    %v1298 = vmax.f32 %v1296, %v1297
    %v1299 = vrot.slane %v1298, 1
    %v1300 = vmax.f32 %v1298, %v1299
    %v1301 = vmax.f32 %v1103, %v1106
    %v1302 = vrot.slane %v1301, 4
    %v1303 = vmax.f32 %v1301, %v1302
    %v1304 = vrot.slane %v1303, 2
    %v1305 = vmax.f32 %v1303, %v1304
    %v1306 = vrot.slane %v1305, 1
    %v1307 = vmax.f32 %v1305, %v1306
    %v1308 = vmax.f32 %v1107, %v1110
    %v1309 = vrot.slane %v1308, 4
    %v1310 = vmax.f32 %v1308, %v1309
    %v1311 = vrot.slane %v1310, 2
    %v1312 = vmax.f32 %v1310, %v1311
    %v1313 = vrot.slane %v1312, 1
    %v1314 = vmax.f32 %v1312, %v1313
    %v1315 = vmax.f32 %v1108, %v1111
    %v1316 = vrot.slane %v1315, 4
    %v1317 = vmax.f32 %v1315, %v1316
    %v1318 = vrot.slane %v1317, 2
    %v1319 = vmax.f32 %v1317, %v1318
    %v1320 = vrot.slane %v1319, 1
    %v1321 = vmax.f32 %v1319, %v1320
    %v1322 = vmax.f32 %v1109, %v1112
    %v1323 = vrot.slane %v1322, 4
    %v1324 = vmax.f32 %v1322, %v1323
    %v1325 = vrot.slane %v1324, 2
    %v1326 = vmax.f32 %v1324, %v1325
    %v1327 = vrot.slane %v1326, 1
    %v1328 = vmax.f32 %v1326, %v1327
    %v1329 = vmax.f32 %v1113, %v1116
    %v1330 = vrot.slane %v1329, 4
    %v1331 = vmax.f32 %v1329, %v1330
    %v1332 = vrot.slane %v1331, 2
    %v1333 = vmax.f32 %v1331, %v1332
    %v1334 = vrot.slane %v1333, 1
    %v1335 = vmax.f32 %v1333, %v1334
    %v1336 = vmax.f32 %v1114, %v1117
    %v1337 = vrot.slane %v1336, 4
    %v1338 = vmax.f32 %v1336, %v1337
    %v1339 = vrot.slane %v1338, 2
    %v1340 = vmax.f32 %v1338, %v1339
    %v1341 = vrot.slane %v1340, 1
    %v1342 = vmax.f32 %v1340, %v1341
    %v1343 = vmax.f32 %v1115, %v1118
    %v1344 = vrot.slane %v1343, 4
    %v1345 = vmax.f32 %v1343, %v1344
    %v1346 = vrot.slane %v1345, 2
    %v1347 = vmax.f32 %v1345, %v1346
    %v1348 = vrot.slane %v1347, 1
    %v1349 = vmax.f32 %v1347, %v1348
    %v1350 = vmax.f32 %v1119, %v1122
    %v1351 = vrot.slane %v1350, 4
    %v1352 = vmax.f32 %v1350, %v1351
    %v1353 = vrot.slane %v1352, 2
    %v1354 = vmax.f32 %v1352, %v1353
    %v1355 = vrot.slane %v1354, 1
    %v1356 = vmax.f32 %v1354, %v1355
    %v1357 = vmax.f32 %v1120, %v1123
    %v1358 = vrot.slane %v1357, 4
    %v1359 = vmax.f32 %v1357, %v1358
    %v1360 = vrot.slane %v1359, 2
    %v1361 = vmax.f32 %v1359, %v1360
    %v1362 = vrot.slane %v1361, 1
    %v1363 = vmax.f32 %v1361, %v1362
    %v1364 = vmax.f32 %v1121, %v1124
    %v1365 = vrot.slane %v1364, 4
    %v1366 = vmax.f32 %v1364, %v1365
    %v1367 = vrot.slane %v1366, 2
    %v1368 = vmax.f32 %v1366, %v1367
    %v1369 = vrot.slane %v1368, 1
    %v1370 = vmax.f32 %v1368, %v1369
    %v1371 = vmax.f32 %v1125, %v1128
    %v1372 = vrot.slane %v1371, 4
    %v1373 = vmax.f32 %v1371, %v1372
    %v1374 = vrot.slane %v1373, 2
    %v1375 = vmax.f32 %v1373, %v1374
    %v1376 = vrot.slane %v1375, 1
    %v1377 = vmax.f32 %v1375, %v1376
    %v1378 = vmax.f32 %v1126, %v1129
    %v1379 = vrot.slane %v1378, 4
    %v1380 = vmax.f32 %v1378, %v1379
    %v1381 = vrot.slane %v1380, 2
    %v1382 = vmax.f32 %v1380, %v1381
    %v1383 = vrot.slane %v1382, 1
    %v1384 = vmax.f32 %v1382, %v1383
    %v1385 = vmax.f32 %v1127, %v1130
    %v1386 = vrot.slane %v1385, 4
    %v1387 = vmax.f32 %v1385, %v1386
    %v1388 = vrot.slane %v1387, 2
    %v1389 = vmax.f32 %v1387, %v1388
    %v1390 = vrot.slane %v1389, 1
    %v1391 = vmax.f32 %v1389, %v1390
    %v1392 = vmax.f32 %v1131, %v1134
    %v1393 = vrot.slane %v1392, 4
    %v1394 = vmax.f32 %v1392, %v1393
    %v1395 = vrot.slane %v1394, 2
    %v1396 = vmax.f32 %v1394, %v1395
    %v1397 = vrot.slane %v1396, 1
    %v1398 = vmax.f32 %v1396, %v1397
    %v1399 = vmax.f32 %v1132, %v1135
    %v1400 = vrot.slane %v1399, 4
    %v1401 = vmax.f32 %v1399, %v1400
    %v1402 = vrot.slane %v1401, 2
    %v1403 = vmax.f32 %v1401, %v1402
    %v1404 = vrot.slane %v1403, 1
    %v1405 = vmax.f32 %v1403, %v1404
    %v1406 = vmax.f32 %v1133, %v1136
    %v1407 = vrot.slane %v1406, 4
    %v1408 = vmax.f32 %v1406, %v1407
    %v1409 = vrot.slane %v1408, 2
    %v1410 = vmax.f32 %v1408, %v1409
    %v1411 = vrot.slane %v1410, 1
    %v1412 = vmax.f32 %v1410, %v1411
    %v1413 = vmax.f32 %v1137, %v1140
    %v1414 = vrot.slane %v1413, 4
    %v1415 = vmax.f32 %v1413, %v1414
    %v1416 = vrot.slane %v1415, 2
    %v1417 = vmax.f32 %v1415, %v1416
    %v1418 = vrot.slane %v1417, 1
    %v1419 = vmax.f32 %v1417, %v1418
    %v1420 = vmax.f32 %v1138, %v1141
    %v1421 = vrot.slane %v1420, 4
    %v1422 = vmax.f32 %v1420, %v1421
    %v1423 = vrot.slane %v1422, 2
    %v1424 = vmax.f32 %v1422, %v1423
    %v1425 = vrot.slane %v1424, 1
    %v1426 = vmax.f32 %v1424, %v1425
    %v1427 = vmax.f32 %v1139, %v1142
    %v1428 = vrot.slane %v1427, 4
    %v1429 = vmax.f32 %v1427, %v1428
    %v1430 = vrot.slane %v1429, 2
    %v1431 = vmax.f32 %v1429, %v1430
    %v1432 = vrot.slane %v1431, 1
    %v1433 = vmax.f32 %v1431, %v1432
    %v1434 = vmax.f32 %v1143, %v1146
    %v1435 = vrot.slane %v1434, 4
    %v1436 = vmax.f32 %v1434, %v1435
    %v1437 = vrot.slane %v1436, 2
    %v1438 = vmax.f32 %v1436, %v1437
    %v1439 = vrot.slane %v1438, 1
    %v1440 = vmax.f32 %v1438, %v1439
    %v1441 = vmax.f32 %v1144, %v1147
    %v1442 = vrot.slane %v1441, 4
    %v1443 = vmax.f32 %v1441, %v1442
    %v1444 = vrot.slane %v1443, 2
    %v1445 = vmax.f32 %v1443, %v1444
    %v1446 = vrot.slane %v1445, 1
    %v1447 = vmax.f32 %v1445, %v1446
    %v1448 = vmax.f32 %v1145, %v1148
    %v1449 = vrot.slane %v1448, 4
    %v1450 = vmax.f32 %v1448, %v1449
    %v1451 = vrot.slane %v1450, 2
    %v1452 = vmax.f32 %v1450, %v1451
    %v1453 = vrot.slane %v1452, 1
    %v1454 = vmax.f32 %v1452, %v1453
    %v1455 = vmax.f32 %v1149, %v1152
    %v1456 = vrot.slane %v1455, 4
    %v1457 = vmax.f32 %v1455, %v1456
    %v1458 = vrot.slane %v1457, 2
    %v1459 = vmax.f32 %v1457, %v1458
    %v1460 = vrot.slane %v1459, 1
    %v1461 = vmax.f32 %v1459, %v1460
    %v1462 = vmax.f32 %v1150, %v1153
    %v1463 = vrot.slane %v1462, 4
    %v1464 = vmax.f32 %v1462, %v1463
    %v1465 = vrot.slane %v1464, 2
    %v1466 = vmax.f32 %v1464, %v1465
    %v1467 = vrot.slane %v1466, 1
    %v1468 = vmax.f32 %v1466, %v1467
    %v1469 = vmax.f32 %v1151, %v1154
    %v1470 = vrot.slane %v1469, 4
    %v1471 = vmax.f32 %v1469, %v1470
    %v1472 = vrot.slane %v1471, 2
    %v1473 = vmax.f32 %v1471, %v1472
    %v1474 = vrot.slane %v1473, 1
    %v1475 = vmax.f32 %v1473, %v1474
    %v1476 = vmax.f32 %v1155, %v1158
    %v1477 = vrot.slane %v1476, 4
    %v1478 = vmax.f32 %v1476, %v1477
    %v1479 = vrot.slane %v1478, 2
    %v1480 = vmax.f32 %v1478, %v1479
    %v1481 = vrot.slane %v1480, 1
    %v1482 = vmax.f32 %v1480, %v1481
    %v1483 = vmax.f32 %v1156, %v1159
    %v1484 = vrot.slane %v1483, 4
    %v1485 = vmax.f32 %v1483, %v1484
    %v1486 = vrot.slane %v1485, 2
    %v1487 = vmax.f32 %v1485, %v1486
    %v1488 = vrot.slane %v1487, 1
    %v1489 = vmax.f32 %v1487, %v1488
    %v1490 = vmax.f32 %v1157, %v1160
    %v1491 = vrot.slane %v1490, 4
    %v1492 = vmax.f32 %v1490, %v1491
    %v1493 = vrot.slane %v1492, 2
    %v1494 = vmax.f32 %v1492, %v1493
    %v1495 = vrot.slane %v1494, 1
    %v1496 = vmax.f32 %v1494, %v1495
    %v1497 = vpack.c.bf16 %v1167, %v1167
    %v1498 = vpack.c.bf16 %v1174, %v1174
    %v1499 = vpack.c.bf16 %v1181, %v1181
    %v1500 = vpack.c.bf16 %v1188, %v1188
    %v1501 = vpack.c.bf16 %v1195, %v1195
    %v1502 = vpack.c.bf16 %v1202, %v1202
    %v1503 = vpack.c.bf16 %v1209, %v1209
    %v1504 = vpack.c.bf16 %v1216, %v1216
    %v1505 = vpack.c.bf16 %v1223, %v1223
    %v1506 = vpack.c.bf16 %v1230, %v1230
    %v1507 = vpack.c.bf16 %v1237, %v1237
    %v1508 = vpack.c.bf16 %v1244, %v1244
    %v1509 = vpack.c.bf16 %v1251, %v1251
    %v1510 = vpack.c.bf16 %v1258, %v1258
    %v1511 = vpack.c.bf16 %v1265, %v1265
    %v1512 = vpack.c.bf16 %v1272, %v1272
    %v1513 = vpack.c.bf16 %v1279, %v1279
    %v1514 = vpack.c.bf16 %v1286, %v1286
    %v1515 = vpack.c.bf16 %v1293, %v1293
    %v1516 = vpack.c.bf16 %v1300, %v1300
    %v1517 = vpack.c.bf16 %v1307, %v1307
    %v1518 = vpack.c.bf16 %v1314, %v1314
    %v1519 = vpack.c.bf16 %v1321, %v1321
    %v1520 = vpack.c.bf16 %v1328, %v1328
    %v1521 = vpack.c.bf16 %v1335, %v1335
    %v1522 = vpack.c.bf16 %v1342, %v1342
    %v1523 = vpack.c.bf16 %v1349, %v1349
    %v1524 = vpack.c.bf16 %v1356, %v1356
    %v1525 = vpack.c.bf16 %v1363, %v1363
    %v1526 = vpack.c.bf16 %v1370, %v1370
    %v1527 = vpack.c.bf16 %v1377, %v1377
    %v1528 = vpack.c.bf16 %v1384, %v1384
    %v1529 = vpack.c.bf16 %v1391, %v1391
    %v1530 = vpack.c.bf16 %v1398, %v1398
    %v1531 = vpack.c.bf16 %v1405, %v1405
    %v1532 = vpack.c.bf16 %v1412, %v1412
    %v1533 = vpack.c.bf16 %v1419, %v1419
    %v1534 = vpack.c.bf16 %v1426, %v1426
    %v1535 = vpack.c.bf16 %v1433, %v1433
    %v1536 = vpack.c.bf16 %v1440, %v1440
    %v1537 = vpack.c.bf16 %v1447, %v1447
    %v1538 = vpack.c.bf16 %v1454, %v1454
    %v1539 = vpack.c.bf16 %v1461, %v1461
    %v1540 = vpack.c.bf16 %v1468, %v1468
    %v1541 = vpack.c.bf16 %v1475, %v1475
    %v1542 = vpack.c.bf16 %v1482, %v1482
    %v1543 = vpack.c.bf16 %v1489, %v1489
    %v1544 = vpack.c.bf16 %v1496, %v1496
    %v1545 = vld [vmem:[#allocation8] sm:$0xf]
    %v1546 = vld [vmem:[#allocation8 + $0x4] sm:$0xf]
    %v1547 = vld [vmem:[#allocation8 + $0x8] sm:$0xf]
    %v1548 = vld [vmem:[#allocation8 + $0xc] sm:$0xf]
    %v1549 = vld [vmem:[#allocation8 + $0x10] sm:$0xf]
    %v1550 = vld [vmem:[#allocation8 + $0x14] sm:$0xf]
    %v1551 = vld [vmem:[#allocation8 + $0x18] sm:$0xf]
    %v1552 = vld [vmem:[#allocation8 + $0x1c] sm:$0xf]
    %v1553 = vld [vmem:[#allocation8 + $0x20] sm:$0xf]
    %v1554 = vld [vmem:[#allocation8 + $0x24] sm:$0xf]
    %v1555 = vld [vmem:[#allocation8 + $0x28] sm:$0xf]
    %v1556 = vld [vmem:[#allocation8 + $0x2c] sm:$0xf]
    %v1557 = vld [vmem:[#allocation8 + $0x30] sm:$0xf]
    %v1558 = vld [vmem:[#allocation8 + $0x34] sm:$0xf]
    %v1559 = vld [vmem:[#allocation8 + $0x38] sm:$0xf]
    %v1560 = vld [vmem:[#allocation8 + $0x3c] sm:$0xf]
    %v1561 = vld [vmem:[#allocation8 + $0x40] sm:$0xf]
    %v1562 = vld [vmem:[#allocation8 + $0x44] sm:$0xf]
    %v1563 = vld [vmem:[#allocation8 + $0x48] sm:$0xf]
    %v1564 = vld [vmem:[#allocation8 + $0x4c] sm:$0xf]
    %v1565 = vld [vmem:[#allocation8 + $0x50] sm:$0xf]
    %v1566 = vld [vmem:[#allocation8 + $0x54] sm:$0xf]
    %v1567 = vld [vmem:[#allocation8 + $0x58] sm:$0xf]
    %v1568 = vld [vmem:[#allocation8 + $0x5c] sm:$0xf]
    %v1569 = vld [vmem:[#allocation8 + $0x60] sm:$0xf]
    %v1570 = vld [vmem:[#allocation8 + $0x64] sm:$0xf]
    %v1571 = vld [vmem:[#allocation8 + $0x68] sm:$0xf]
    %v1572 = vld [vmem:[#allocation8 + $0x6c] sm:$0xf]
    %v1573 = vld [vmem:[#allocation8 + $0x70] sm:$0xf]
    %v1574 = vld [vmem:[#allocation8 + $0x74] sm:$0xf]
    %v1575 = vld [vmem:[#allocation8 + $0x78] sm:$0xf]
    %v1576 = vld [vmem:[#allocation8 + $0x7c] sm:$0xf]
    %v1577 = vld [vmem:[#allocation8 + $0x80] sm:$0xf]
    %v1578 = vld [vmem:[#allocation8 + $0x84] sm:$0xf]
    %v1579 = vld [vmem:[#allocation8 + $0x88] sm:$0xf]
    %v1580 = vld [vmem:[#allocation8 + $0x8c] sm:$0xf]
    %v1581 = vld [vmem:[#allocation8 + $0x90] sm:$0xf]
    %v1582 = vld [vmem:[#allocation8 + $0x94] sm:$0xf]
    %v1583 = vld [vmem:[#allocation8 + $0x98] sm:$0xf]
    %v1584 = vld [vmem:[#allocation8 + $0x9c] sm:$0xf]
    %v1585 = vld [vmem:[#allocation8 + $0xa0] sm:$0xf]
    %v1586 = vld [vmem:[#allocation8 + $0xa4] sm:$0xf]
    %v1587 = vld [vmem:[#allocation8 + $0xa8] sm:$0xf]
    %v1588 = vld [vmem:[#allocation8 + $0xac] sm:$0xf]
    %v1589 = vld [vmem:[#allocation8 + $0xb0] sm:$0xf]
    %v1590 = vld [vmem:[#allocation8 + $0xb4] sm:$0xf]
    %v1591 = vld [vmem:[#allocation8 + $0xb8] sm:$0xf]
    %v1592 = vld [vmem:[#allocation8 + $0xbc] sm:$0xf]
    %v1593 = vld [vmem:[%s5] sm:$0x1]
    %v1595 = vlaneseq
    %v1596 = vshrl.u32 %v1595, 7
    %v1597 = vsub.s32 0, %v1596
    %v1598 = vrot.slane %v1593, %v1597
    %v1648 = vunpack.c.l.b16 %v1497
    %v1649 = vunpack.c.l.b16 %v1498
    %v1650 = vunpack.c.l.b16 %v1499
    %v1651 = vunpack.c.l.b16 %v1500
    %v1652 = vunpack.c.l.b16 %v1501
    %v1653 = vunpack.c.l.b16 %v1502
    %v1654 = vunpack.c.l.b16 %v1503
    %v1655 = vunpack.c.l.b16 %v1504
    %v1656 = vunpack.c.l.b16 %v1505
    %v1657 = vunpack.c.l.b16 %v1506
    %v1658 = vunpack.c.l.b16 %v1507
    %v1659 = vunpack.c.l.b16 %v1508
    %v1660 = vunpack.c.l.b16 %v1509
    %v1661 = vunpack.c.l.b16 %v1510
    %v1662 = vunpack.c.l.b16 %v1511
    %v1663 = vunpack.c.l.b16 %v1512
    %v1664 = vunpack.c.l.b16 %v1513
    %v1665 = vunpack.c.l.b16 %v1514
    %v1666 = vunpack.c.l.b16 %v1515
    %v1667 = vunpack.c.l.b16 %v1516
    %v1668 = vunpack.c.l.b16 %v1517
    %v1669 = vunpack.c.l.b16 %v1518
    %v1670 = vunpack.c.l.b16 %v1519
    %v1671 = vunpack.c.l.b16 %v1520
    %v1672 = vunpack.c.l.b16 %v1521
    %v1673 = vunpack.c.l.b16 %v1522
    %v1674 = vunpack.c.l.b16 %v1523
    %v1675 = vunpack.c.l.b16 %v1524
    %v1676 = vunpack.c.l.b16 %v1525
    %v1677 = vunpack.c.l.b16 %v1526
    %v1678 = vunpack.c.l.b16 %v1527
    %v1679 = vunpack.c.l.b16 %v1528
    %v1680 = vunpack.c.l.b16 %v1529
    %v1681 = vunpack.c.l.b16 %v1530
    %v1682 = vunpack.c.l.b16 %v1531
    %v1683 = vunpack.c.l.b16 %v1532
    %v1684 = vunpack.c.l.b16 %v1533
    %v1685 = vunpack.c.l.b16 %v1534
    %v1686 = vunpack.c.l.b16 %v1535
    %v1687 = vunpack.c.l.b16 %v1536
    %v1688 = vunpack.c.l.b16 %v1537
    %v1689 = vunpack.c.l.b16 %v1538
    %v1690 = vunpack.c.l.b16 %v1539
    %v1691 = vunpack.c.l.b16 %v1540
    %v1692 = vunpack.c.l.b16 %v1541
    %v1693 = vunpack.c.l.b16 %v1542
    %v1694 = vunpack.c.l.b16 %v1543
    %v1695 = vunpack.c.l.b16 %v1544
    %vm1696 = vcmask 1041409
    %v1697 = vsel %vm1696, %v1651, %v1648
    %vm1698 = vcmask 1042434
    %v1699 = vsel %vm1698, %v1654, %v1697
    %vm1700 = vcmask 1043459
    %v1701 = vsel %vm1700, %v1657, %v1699
    %vm1702 = vcmask 1044484
    %v1703 = vsel %vm1702, %v1660, %v1701
    %vm1704 = vcmask 1045509
    %v1705 = vsel %vm1704, %v1663, %v1703
    %vm1706 = vcmask 1046534
    %v1707 = vsel %vm1706, %v1666, %v1705
    %vm1708 = vcmask 1047559
    %v1709 = vsel %vm1708, %v1669, %v1707
    %v1710 = vsel %vm1696, %v1652, %v1649
    %v1711 = vsel %vm1698, %v1655, %v1710
    %v1712 = vsel %vm1700, %v1658, %v1711
    %v1713 = vsel %vm1702, %v1661, %v1712
    %v1714 = vsel %vm1704, %v1664, %v1713
    %v1715 = vsel %vm1706, %v1667, %v1714
    %v1716 = vsel %vm1708, %v1670, %v1715
    %v1717 = vsel %vm1696, %v1653, %v1650
    %v1718 = vsel %vm1698, %v1656, %v1717
    %v1719 = vsel %vm1700, %v1659, %v1718
    %v1720 = vsel %vm1702, %v1662, %v1719
    %v1721 = vsel %vm1704, %v1665, %v1720
    %v1722 = vsel %vm1706, %v1668, %v1721
    %v1723 = vsel %vm1708, %v1671, %v1722
    %v1724 = vsel %vm1696, %v1675, %v1672
    %v1725 = vsel %vm1698, %v1678, %v1724
    %v1726 = vsel %vm1700, %v1681, %v1725
    %v1727 = vsel %vm1702, %v1684, %v1726
    %v1728 = vsel %vm1704, %v1687, %v1727
    %v1729 = vsel %vm1706, %v1690, %v1728
    %v1730 = vsel %vm1708, %v1693, %v1729
    %v1731 = vsel %vm1696, %v1676, %v1673
    %v1732 = vsel %vm1698, %v1679, %v1731
    %v1733 = vsel %vm1700, %v1682, %v1732
    %v1734 = vsel %vm1702, %v1685, %v1733
    %v1735 = vsel %vm1704, %v1688, %v1734
    %v1736 = vsel %vm1706, %v1691, %v1735
    %v1737 = vsel %vm1708, %v1694, %v1736
    %v1738 = vsel %vm1696, %v1677, %v1674
    %v1739 = vsel %vm1698, %v1680, %v1738
    %v1740 = vsel %vm1700, %v1683, %v1739
    %v1741 = vsel %vm1702, %v1686, %v1740
    %v1742 = vsel %vm1704, %v1689, %v1741
    %v1743 = vsel %vm1706, %v1692, %v1742
    %v1744 = vsel %vm1708, %v1695, %v1743
    %v1745 = vpack.c.b16 %v1730, %v1709
    %v1746 = vpack.c.b16 %v1737, %v1716
    %v1747 = vpack.c.b16 %v1744, %v1723
    %v1799 = vunpack.c.l.b16 %v1545
    %v1800 = vunpack.c.l.b16 %v1546
    %v1801 = vunpack.c.l.b16 %v1547
    %v1802 = vunpack.c.l.b16 %v1548
    %v1803 = vunpack.c.l.b16 %v1549
    %v1804 = vunpack.c.l.b16 %v1550
    %v1805 = vunpack.c.l.b16 %v1551
    %v1806 = vunpack.c.l.b16 %v1552
    %v1807 = vunpack.c.l.b16 %v1553
    %v1808 = vunpack.c.l.b16 %v1554
    %v1809 = vunpack.c.l.b16 %v1555
    %v1810 = vunpack.c.l.b16 %v1556
    %v1811 = vunpack.c.l.b16 %v1557
    %v1812 = vunpack.c.l.b16 %v1558
    %v1813 = vunpack.c.l.b16 %v1559
    %v1814 = vunpack.c.l.b16 %v1560
    %v1815 = vunpack.c.l.b16 %v1561
    %v1816 = vunpack.c.l.b16 %v1562
    %v1817 = vunpack.c.l.b16 %v1563
    %v1818 = vunpack.c.l.b16 %v1564
    %v1819 = vunpack.c.l.b16 %v1565
    %v1820 = vunpack.c.l.b16 %v1566
    %v1821 = vunpack.c.l.b16 %v1567
    %v1822 = vunpack.c.l.b16 %v1568
    %v1823 = vunpack.c.l.b16 %v1569
    %v1824 = vunpack.c.l.b16 %v1570
    %v1825 = vunpack.c.l.b16 %v1571
    %v1826 = vunpack.c.l.b16 %v1572
    %v1827 = vunpack.c.l.b16 %v1573
    %v1828 = vunpack.c.l.b16 %v1574
    %v1829 = vunpack.c.l.b16 %v1575
    %v1830 = vunpack.c.l.b16 %v1576
    %v1831 = vunpack.c.l.b16 %v1577
    %v1832 = vunpack.c.l.b16 %v1578
    %v1833 = vunpack.c.l.b16 %v1579
    %v1834 = vunpack.c.l.b16 %v1580
    %v1835 = vunpack.c.l.b16 %v1581
    %v1836 = vunpack.c.l.b16 %v1582
    %v1837 = vunpack.c.l.b16 %v1583
    %v1838 = vunpack.c.l.b16 %v1584
    %v1839 = vunpack.c.l.b16 %v1585
    %v1840 = vunpack.c.l.b16 %v1586
    %v1841 = vunpack.c.l.b16 %v1587
    %v1842 = vunpack.c.l.b16 %v1588
    %v1843 = vunpack.c.l.b16 %v1589
    %v1844 = vunpack.c.l.b16 %v1590
    %v1845 = vunpack.c.l.b16 %v1591
    %v1846 = vunpack.c.l.b16 %v1592
    %v1847 = vpack.c.b16 %v1800, %v1799
    %v1848 = vpack.c.b16 %v1802, %v1801
    %v1849 = vpack.c.b16 %v1804, %v1803
    %v1850 = vpack.c.b16 %v1806, %v1805
    %v1851 = vpack.c.b16 %v1808, %v1807
    %v1852 = vpack.c.b16 %v1810, %v1809
    %v1853 = vpack.c.b16 %v1812, %v1811
    %v1854 = vpack.c.b16 %v1814, %v1813
    %v1855 = vpack.c.b16 %v1816, %v1815
    %v1856 = vpack.c.b16 %v1818, %v1817
    %v1857 = vpack.c.b16 %v1820, %v1819
    %v1858 = vpack.c.b16 %v1822, %v1821
    %v1859 = vpack.c.b16 %v1824, %v1823
    %v1860 = vpack.c.b16 %v1826, %v1825
    %v1861 = vpack.c.b16 %v1828, %v1827
    %v1862 = vpack.c.b16 %v1830, %v1829
    %v1863 = vpack.c.b16 %v1832, %v1831
    %v1864 = vpack.c.b16 %v1834, %v1833
    %v1865 = vpack.c.b16 %v1836, %v1835
    %v1866 = vpack.c.b16 %v1838, %v1837
    %v1867 = vpack.c.b16 %v1840, %v1839
    %v1868 = vpack.c.b16 %v1842, %v1841
    %v1869 = vpack.c.b16 %v1844, %v1843
    %v1870 = vpack.c.b16 %v1846, %v1845
    %1895 = vmatprep.subr.bf16.mxu0 0
    %1896 = vmatpush1.bf16.msra.mxu0 %v1847
    %1897 = vmatprep.subr.bf16.mxu0 0
    %1898 = vmatpush1.bf16.msra.mxu0 %v1848
    %1899 = vmatprep.subr.bf16.mxu0 0
    %1900 = vmatpush1.bf16.msra.mxu0 %v1849
    %1901 = vmatprep.subr.bf16.mxu0 0
    %1902 = vmatpush1.bf16.msra.mxu0 %v1850
    %1903 = vmatprep.subr.bf16.mxu0 0
    %1904 = vmatpush1.bf16.msra.mxu0 %v1851
    %1905 = vmatprep.subr.bf16.mxu0 0
    %1906 = vmatpush1.bf16.msra.mxu0 %v1852
    %1907 = vmatprep.subr.bf16.mxu0 0
    %1908 = vmatpush1.bf16.msra.mxu0 %v1853
    %1909 = vmatprep.subr.bf16.mxu0 0
    %1910 = vmatpush1.bf16.msra.mxu0 %v1854
    %1911 = vmatprep.subr.bf16.mxu0 0
    %1912 = vmatpush1.bf16.msra.mxu0 %v1855
    %1913 = vmatprep.subr.bf16.mxu0 0
    %1914 = vmatpush1.bf16.msra.mxu0 %v1856
    %1915 = vmatprep.subr.bf16.mxu0 0
    %1916 = vmatpush1.bf16.msra.mxu0 %v1857
    %1917 = vmatprep.subr.bf16.mxu0 0
    %1918 = vmatpush1.bf16.msra.mxu0 %v1858
    %1919 = vmatprep.subr.bf16.mxu0 0
    %1920 = vmatpush1.bf16.msra.mxu0 %v1859
    %1921 = vmatprep.subr.bf16.mxu0 0
    %1922 = vmatpush1.bf16.msra.mxu0 %v1860
    %1923 = vmatprep.subr.bf16.mxu0 0
    %1924 = vmatpush1.bf16.msra.mxu0 %v1861
    %1925 = vmatprep.subr.bf16.mxu0 0
    %1926 = vmatpush1.bf16.msra.mxu0 %v1862
    %1927 = vmatprep.mubr.bf16.mxu0 %v1746
    %1928 = vmatmul.mubr.bf16.gmra.mrb[0].mxu0 %v1745
    %v1929 = vpop.f32.mrb[0].mxu0
    %v1930 = vadd.f32 %v1598, %v1929
    %v1931 = vpop.f32.mrb[0].mxu0
    %v1932 = vpop.f32.mrb[0].mxu0
    %v1933 = vadd.f32 %v1598, %v1932
    %v1934 = vpop.f32.mrb[0].mxu0
    %1935 = vdwg.mxu0
    %1936 = vmatprep.subr.bf16.mxu0 0
    %1937 = vmatpush1.bf16.msra.mxu0 %v1863
    %1938 = vmatprep.subr.bf16.mxu0 0
    %1939 = vmatpush1.bf16.msra.mxu0 %v1864
    %1940 = vmatprep.subr.bf16.mxu0 0
    %1941 = vmatpush1.bf16.msra.mxu0 %v1865
    %1942 = vmatprep.subr.bf16.mxu0 0
    %1943 = vmatpush1.bf16.msra.mxu0 %v1866
    %1944 = vmatprep.subr.bf16.mxu0 0
    %1945 = vmatpush1.bf16.msra.mxu0 %v1867
    %1946 = vmatprep.subr.bf16.mxu0 0
    %1947 = vmatpush1.bf16.msra.mxu0 %v1868
    %1948 = vmatprep.subr.bf16.mxu0 0
    %1949 = vmatpush1.bf16.msra.mxu0 %v1869
    %1950 = vmatprep.subr.bf16.mxu0 0
    %1951 = vmatpush1.bf16.msra.mxu0 %v1870
    %1952 = vmatprep.subr.bf16.mxu0 0
    %1953 = vmatpush1.bf16.msra.mxu0 0
    %1954 = vmatprep.subr.bf16.mxu0 0
    %1955 = vmatpush1.bf16.msra.mxu0 0
    %1956 = vmatprep.subr.bf16.mxu0 0
    %1957 = vmatpush1.bf16.msra.mxu0 0
    %1958 = vmatprep.subr.bf16.mxu0 0
    %1959 = vmatpush1.bf16.msra.mxu0 0
    %1960 = vmatprep.subr.bf16.mxu0 0
    %1961 = vmatpush1.bf16.msra.mxu0 0
    %1962 = vmatprep.subr.bf16.mxu0 0
    %1963 = vmatpush1.bf16.msra.mxu0 0
    %1964 = vmatprep.subr.bf16.mxu0 0
    %1965 = vmatpush1.bf16.msra.mxu0 0
    %1966 = vmatprep.subr.bf16.mxu0 0
    %1967 = vmatpush1.bf16.msra.mxu0 0
    %1968 = vmatprep.mubr.bf16.mxu0 0
    %1969 = vmatmul.mubr.bf16.gmra.mrb[0].mxu0 %v1747
    %v1970 = vpop.f32.mrb[0].mxu0
    %v1971 = vadd.f32 %v1930, %v1970
    %v1972 = vpop.f32.mrb[0].mxu0
    %v1973 = vpop.f32.mrb[0].mxu0
    %v1974 = vadd.f32 %v1933, %v1973
    %v1975 = vpop.f32.mrb[0].mxu0
    %1976 = vdwg.mxu0
    %1977 = vst [vmem:[#allocation10] sm:$0xff] %v1971
    %1978 = vst [vmem:[#allocation10 + $0x8] sm:$0xff] %v1974
    // Predicated region
    $region42: #{tpu_custom_call.1} parent=1 // pred_check
      _
    $region43: #{tpu_custom_call.1} parent=1 // pred_check_branch
      %1980 = sbr.rel (0) target = $region45
    $region44: #{tpu_custom_call.1} parent=1 // pred_region
      %s1982 = ssub.s32 256, 256
      %1983 = vsyncadd [#allocation4], %s1982
      %s1984 = sshll.u32 [#allocation10], 4
      %s1985 = int_to_ptr.vmem [resolvable:$true] %s1984
      %1990 = dma.vmem_to_hbm [thread:$0]  %s1985, 256, %s6, [#allocation4], 128, 128, 8
    $region45: #{tpu_custom_call.1} parent=1 // pred_fallthru
      _
    // Predicated region
    $region46: #{tpu_custom_call.1} parent=1 // pred_check
      _
    $region47: #{tpu_custom_call.1} parent=1 // pred_check_branch
      %1992 = sbr.rel (0) target = $region49
    $region48: #{tpu_custom_call.1} parent=1 // pred_region
      %1993 = dma.done [#allocation4], 256
    $region49: #{tpu_custom_call.1} parent=1 // pred_fallthru
      _
    %1994 = vsyncpa [#allocation3], 1
    %1995 = vsyncpa [#allocation6], 1
    %1996 = vsyncpa [#allocation9], 1
    %1997 = vsyncpa [#allocation4], 1

</llo_original>
